<compile_context>
chip_gen: v7x
topology: tpu7x:2x2x1
jax: 0.10.0
libtpu: 0.0.40
codegen_flags: <defaults>
</compile_context>

<pallas_src>
import functools
import math

import numpy as np
import jax
import jax.numpy as jnp
from jax import lax
from jax.experimental import pallas as pl
from jax.experimental.pallas import tpu as pltpu


# ---------------------------------------------------------------------------
# Host-side interpolation weight matrices (PyTorch semantics).
# ---------------------------------------------------------------------------

@functools.lru_cache(maxsize=None)
def _bicubic_weight_matrix(in_size: int, out_size: int,
                           align_corners: bool = False,
                           a: float = -0.75) -> np.ndarray:
    """Dense (out_size, in_size) bicubic interpolation matrix, PyTorch semantics."""
    if align_corners:
        if out_size > 1:
            src = np.arange(out_size, dtype=np.float64) * (in_size - 1) / (out_size - 1)
        else:
            src = np.zeros((out_size,), dtype=np.float64)
    else:
        scale = in_size / out_size
        src = (np.arange(out_size, dtype=np.float64) + 0.5) * scale - 0.5

    def cc1(t):  # |t| <= 1
        return ((a + 2.0) * t - (a + 3.0)) * t * t + 1.0

    def cc2(t):  # 1 < |t| < 2
        return ((a * t - 5.0 * a) * t + 8.0 * a) * t - 4.0 * a

    W = np.zeros((out_size, in_size), dtype=np.float64)
    for o in range(out_size):
        x = src[o]
        x0 = int(np.floor(x))
        t = x - x0
        coeffs = (cc2(t + 1.0), cc1(t), cc1(1.0 - t), cc2(2.0 - t))
        for k in range(4):
            idx = min(max(x0 - 1 + k, 0), in_size - 1)  # border clamp (replicate)
            W[o, idx] += coeffs[k]
    return W.astype(np.float32)


@functools.lru_cache(maxsize=None)
def _bilinear_weight_matrix(in_size: int, out_size: int,
                            align_corners: bool = False) -> np.ndarray:
    """Dense (out_size, in_size) bilinear interpolation matrix, PyTorch semantics."""
    if align_corners:
        if out_size > 1:
            src = np.arange(out_size, dtype=np.float64) * (in_size - 1) / (out_size - 1)
        else:
            src = np.zeros((out_size,), dtype=np.float64)
    else:
        scale = in_size / out_size
        src = (np.arange(out_size, dtype=np.float64) + 0.5) * scale - 0.5
        src = np.clip(src, 0.0, None)           # PyTorch clamps negative coords
    src = np.minimum(src, in_size - 1)
    W = np.zeros((out_size, in_size), dtype=np.float64)
    for o in range(out_size):
        x0 = min(int(np.floor(src[o])), in_size - 1)
        x1 = min(x0 + 1, in_size - 1)
        t = src[o] - x0
        W[o, x0] += 1.0 - t
        W[o, x1] += t
    return W.astype(np.float32)


def _resize_weight_matrix(mode: str, in_size: int, out_size: int,
                          align_corners: bool) -> np.ndarray:
    if mode == "bicubic":
        return _bicubic_weight_matrix(in_size, out_size, align_corners)
    if mode == "bilinear":
        return _bilinear_weight_matrix(in_size, out_size, align_corners)
    raise NotImplementedError(f"resize(mode={mode}) not implemented")


# ---------------------------------------------------------------------------
# Sizing helpers (sublane/lane-padded VMEM model, generation-aware budget).
# ---------------------------------------------------------------------------

def _round_up(v: int, m: int) -> int:
    return ((v + m - 1) // m) * m


def _sublane_tile(itemsize: int) -> int:
    # 8 sublanes of 32-bit; sub-32-bit dtypes pack along sublanes.
    return max(8, 32 // int(itemsize))


def _vmem_bytes(B, Hp, W, H_out, W_out, x_isz, w_isz, slab_out) -> int:
    """Padded-shape VMEM estimate: pipelined blocks + in-kernel f32 live values."""
    lane = 128
    sub_x = _sublane_tile(x_isz)
    sub_w = _sublane_tile(w_isz)
    # Double-buffered pipelined input / output blocks.
    x_blk = 2 * B * _round_up(Hp, sub_x) * _round_up(W, lane) * x_isz
    if slab_out:
        o_blk = 2 * _round_up(H_out, sub_x) * _round_up(B * W_out, lane) * x_isz
    else:
        o_blk = 2 * B * _round_up(H_out, sub_x) * _round_up(W_out, lane) * x_isz
    # Weight blocks (constant index_map, but count double-buffered allocations).
    w_blk = 2 * (_round_up(H_out, sub_w) * _round_up(Hp, lane)
                 + _round_up(W, sub_w) * _round_up(W_out, lane)) * w_isz
    # In-kernel f32 live values: cast input, column-pass result, regrouped
    # intermediate, row-pass result.
    live = (B * _round_up(Hp, 8) * _round_up(W, lane)
            + B * _round_up(Hp, 8) * _round_up(W_out, lane)
            + _round_up(Hp, 8) * _round_up(B * W_out, lane)
            + _round_up(H_out, 8) * _round_up(B * W_out, lane)) * 4
    return x_blk + o_blk + w_blk + live


def _choose_batch(P, Hp, W, H_out, W_out, x_isz, w_isz, slab_out, budget,
                  b_cap: int = 64):
    """Planes per grid step, under the VMEM budget, with G >= 2 when possible."""
    b_hi = min(P, b_cap)                 # b_cap bounds in-kernel unrolled code size
    if P >= 2:
        b_hi = min(b_hi, -(-P // 2))     # keep >= 2 grid steps so both v7x cores work
    b = 1
    for cand in range(1, b_hi + 1):
        if _vmem_bytes(cand, Hp, W, H_out, W_out, x_isz, w_isz, slab_out) <= budget:
            b = cand
        else:
            break
    g = -(-P // b)
    b = -(-P // g)                       # spread planes evenly -> <= g-1 padded planes
    return int(b), int(g)


def _vmem_capacity_bytes() -> int:
    try:
        cap = int(pltpu.get_tpu_info().vmem_capacity_bytes)
    except Exception:
        cap = 64 * 1024 * 1024           # conservative (v7x-sized) fallback
    return max(cap, 32 * 1024 * 1024)


# ---------------------------------------------------------------------------
# Kernel.
# ---------------------------------------------------------------------------

def _upsample_kernel(wh_ref, wwt_ref, x_ref, o_ref, *, slab_out, precision):
    # wh_ref : (H_out, Hp)              weights, compute dtype
    # wwt_ref: (W, W_out)               weights, compute dtype
    # x_ref  : (B, Hp, W)               input dtype
    # o_ref  : (1, H_out, B*W_out)      if slab_out
    #          (B, H_out, W_out)        otherwise (W_out % 128 == 0)
    B, Hp, W = x_ref.shape
    W_out = wwt_ref.shape[1]
    cdt = wwt_ref.dtype

    # ---- column pass: ONE MXU matmul for all B planes -----------------------
    # Hp is sublane-aligned, so the (B, Hp, W) -> (B*Hp, W) merge is layout-free.
    xm = x_ref[...].astype(cdt).reshape(B * Hp, W)
    t = jnp.dot(xm, wwt_ref[...],
                preferred_element_type=jnp.float32,
                precision=precision)                       # (B*Hp, W_out) f32

    # ---- regroup (b,h) sublanes -> h sublanes, (b, w_out) lanes -------------
    # Intermediate stays in f32 (PyTorch fp32 opmath); slices are sublane-tile
    # aligned (Hp % 8 == 0), the concatenate is lane placement (XLU/VPU work
    # that overlaps the MXU).
    s = jnp.concatenate([t[b * Hp:(b + 1) * Hp, :] for b in range(B)],
                        axis=1)                            # (Hp, B*W_out) f32

    # ---- row pass: ONE MXU matmul, N = B*W_out (lane dense) -----------------
    wh = wh_ref[...].astype(jnp.float32)
    out = jnp.dot(wh, s,
                  preferred_element_type=jnp.float32,
                  precision=precision)                     # (H_out, B*W_out) f32

    if slab_out:
        # Single lane-dense store; wrapper undoes the plane interleave.
        o_ref[0] = out.astype(o_ref.dtype)
    else:
        # W_out is a multiple of 128: per-plane stores are already unmasked and
        # lane-aligned, keep the natural (B, H_out, W_out) output layout.
        for b in range(B):
            o_ref[b] = out[:, b * W_out:(b + 1) * W_out].astype(o_ref.dtype)


# ---------------------------------------------------------------------------
# Wrapper (UpSampleLayer.forward semantics, NCHW input).
# ---------------------------------------------------------------------------

def upsample_layer(x: jax.Array,
                   mode: str = "bicubic",
                   size=None,
                   factor: int = 2,
                   align_corners: bool = False) -> jax.Array:
    if x.ndim != 4:
        raise ValueError("expected NCHW input")
    N, C, H, W = x.shape

    if size is not None:
        size = tuple(size) if isinstance(size, (list, tuple)) else (int(size), int(size))
        if (H, W) == tuple(size):
            return x
        H_out, W_out = int(size[0]), int(size[1])
    else:
        if factor == 1:
            return x
        H_out, W_out = int(math.floor(H * factor)), int(math.floor(W * factor))

    if mode not in ("bicubic", "bilinear"):
        # TODO(synk): 'nearest' / 'area' modes not implemented in the Pallas kernel.
        raise NotImplementedError(f"mode={mode} not implemented in Pallas kernel")
    if x.dtype not in (jnp.float32, jnp.bfloat16):
        # TODO(synk): integer dtypes need rounding before the final cast.
        raise NotImplementedError(f"dtype={x.dtype} not supported")

    # Compute dtype & explicit matmul precision.
    cdt = jnp.bfloat16 if x.dtype == jnp.bfloat16 else jnp.float32
    prec = lax.Precision.HIGHEST if cdt == jnp.float32 else None

    x_isz = jnp.dtype(x.dtype).itemsize
    w_isz = jnp.dtype(cdt).itemsize
    sub_x = _sublane_tile(x_isz)
    Hp = _round_up(H, sub_x)   # sublane-aligned -> layout-free (B,Hp,W)->(B*Hp,W) merge

    wh_np = _resize_weight_matrix(mode, H, H_out, align_corners)       # (H_out, H)
    if Hp != H:
        wh_np = np.pad(wh_np, ((0, 0), (0, Hp - H)))                   # zero cols
    wwt_np = _resize_weight_matrix(mode, W, W_out, align_corners).T    # (W, W_out)
    wh = jnp.asarray(wh_np, dtype=cdt)
    wwt = jnp.asarray(wwt_np, dtype=cdt)

    P = N * C
    # Lane-dense slab output whenever per-plane stores would be masked.
    slab_out = (W_out % 128) != 0

    # Generation-aware VMEM budget (v5e/v6e: 128 MiB -> ~90/96 MiB, v7x: 64 -> ~45/48).
    vmem_cap = _vmem_capacity_bytes()
    budget = int(vmem_cap * 0.70)
    vmem_limit = int(vmem_cap * 0.75)

    B, G = _choose_batch(P, Hp, W, H_out, W_out, x_isz, w_isz, slab_out, budget)
    P_pad = G * B

    x_flat = x.reshape(P, H, W)
    if P_pad != P or Hp != H:
        x_flat = jnp.pad(x_flat, ((0, P_pad - P), (0, Hp - H), (0, 0)))

    kernel = functools.partial(_upsample_kernel, slab_out=slab_out, precision=prec)

    flops = int(2 * P_pad * (Hp * W * W_out + H_out * Hp * W_out))
    bytes_accessed = int(P_pad * Hp * W * x_isz
                         + P_pad * H_out * W_out * x_isz
                         + (H_out * Hp + W * W_out) * w_isz)
    cost = pl.CostEstimate(flops=flops, transcendentals=0,
                           bytes_accessed=bytes_accessed)

    in_specs = [
        # Constant index_map -> the weight blocks are DMA'd once and revisited.
        pl.BlockSpec((H_out, Hp), lambda i: (0, 0)),
        pl.BlockSpec((W, W_out), lambda i: (0, 0)),
        pl.BlockSpec((B, Hp, W), lambda i: (i, 0, 0)),
    ]
    if slab_out:
        out_shape = jax.ShapeDtypeStruct((G, H_out, B * W_out), x.dtype)
        out_specs = pl.BlockSpec((1, H_out, B * W_out), lambda i: (i, 0, 0))
    else:
        out_shape = jax.ShapeDtypeStruct((P_pad, H_out, W_out), x.dtype)
        out_specs = pl.BlockSpec((B, H_out, W_out), lambda i: (i, 0, 0))

    out = pl.pallas_call(
        kernel,
        out_shape=out_shape,
        grid_spec=pltpu.PrefetchScalarGridSpec(
            num_scalar_prefetch=0,
            grid=(G,),
            in_specs=in_specs,
            out_specs=out_specs,
        ),
        compiler_params=pltpu.CompilerParams(
            dimension_semantics=("parallel",),
            vmem_limit_bytes=vmem_limit,
        ),
        cost_estimate=cost,
    )(wh, wwt, x_flat)

    if slab_out:
        # Undo the plane/row interleave (wrapper-side layout plumbing).
        out = out.reshape(G, H_out, B, W_out).transpose(0, 2, 1, 3)
        out = out.reshape(P_pad, H_out, W_out)
    out = out[:P].reshape(N, C, H_out, W_out)
    return out


# ---------------------------------------------------------------------------
# Self-test.
# ---------------------------------------------------------------------------

if __name__ == "__main__":
    key = jax.random.PRNGKey(0)
    # Small NCHW input consistent with the module: batch=2, channels=4, 16x16 spatial.
    x = jax.random.normal(key, (2, 4, 16, 16), dtype=jnp.float32)

    y = upsample_layer(x, mode="bicubic", size=None, factor=2, align_corners=False)
    y = jax.block_until_ready(y)

    assert y.shape == (2, 4, 32, 32), y.shape
    assert y.dtype == x.dtype

    # Numerical sanity check against the same separable-linear reference on host.
    wh_np = _bicubic_weight_matrix(16, 32, False)      # (32, 16)
    wwt_np = _bicubic_weight_matrix(16, 32, False).T   # (16, 32)
    ref = np.einsum("oh,nchw,wv->ncov",
                    wh_np.astype(np.float64),
                    np.asarray(x, dtype=np.float64),
                    wwt_np.astype(np.float64))
    err = float(np.max(np.abs(np.asarray(y, dtype=np.float64) - ref)))
    assert err < 1e-3, err

    print("KERNEL_OK")
</pallas_src>

<mosaic_0001>
module attributes {stable_mosaic.version = 11 : i64} {
  func.func @_upsample_kernel(%arg0: i32, %arg1: memref<32x16xf32, #tpu.memory_space<vmem>>, %arg2: memref<16x32xf32, #tpu.memory_space<vmem>>, %arg3: memref<4x16x16xf32, #tpu.memory_space<vmem>>, %arg4: memref<1x32x128xf32, #tpu.memory_space<vmem>>) attributes {dimension_semantics = [#tpu.dimension_semantics<parallel>], iteration_bounds = array<i64: 2>, scalar_prefetch = 0 : i64, scratch_operands = 0 : i64, tpu.core_type = #tpu.core_type<tc>, window_params = [{pipeline_mode = #tpu.pipeline_mode<synchronous>, transform_indices = @transform_0, window_bounds = array<i64: 32, 16>}, {pipeline_mode = #tpu.pipeline_mode<synchronous>, transform_indices = @transform_1, window_bounds = array<i64: 16, 32>}, {transform_indices = @transform_2, window_bounds = array<i64: 4, 16, 16>}, {transform_indices = @transform_3, window_bounds = array<i64: 1, 32, 128>}]} {
    %c0 = arith.constant 0 : index
    %c0_0 = arith.constant 0 : index
    %c0_1 = arith.constant 0 : index
    %0 = vector.load %arg3[%c0, %c0_0, %c0_1] : memref<4x16x16xf32, #tpu.memory_space<vmem>>, vector<4x16x16xf32>
    %1 = vector.shape_cast %0 : vector<4x16x16xf32> to vector<64x16xf32>
    %c0_2 = arith.constant 0 : index
    %c0_3 = arith.constant 0 : index
    %2 = vector.load %arg2[%c0_2, %c0_3] : memref<16x32xf32, #tpu.memory_space<vmem>>, vector<16x32xf32>
    %cst = arith.constant dense<0.000000e+00> : vector<64x32xf32>
    %3 = tpu.matmul %1, %2, %cst {dimension_numbers = #tpu.dot_dimension_numbers<[1], [0], [0], [1], [0, 0, 1, 1], [], []>, precision = #tpu.contract_precision<fp32>} : vector<64x16xf32>, vector<16x32xf32>, vector<64x32xf32> -> vector<64x32xf32>
    %4 = vector.extract_strided_slice %3 {offsets = [0, 0], sizes = [16, 32], strides = [1, 1]} : vector<64x32xf32> to vector<16x32xf32>
    %5 = vector.extract_strided_slice %3 {offsets = [16, 0], sizes = [16, 32], strides = [1, 1]} : vector<64x32xf32> to vector<16x32xf32>
    %6 = vector.extract_strided_slice %3 {offsets = [32, 0], sizes = [16, 32], strides = [1, 1]} : vector<64x32xf32> to vector<16x32xf32>
    %7 = vector.extract_strided_slice %3 {offsets = [48, 0], sizes = [16, 32], strides = [1, 1]} : vector<64x32xf32> to vector<16x32xf32>
    %8 = tpu.concatenate %4, %5, %6, %7 in 1 : vector<16x32xf32>, vector<16x32xf32>, vector<16x32xf32>, vector<16x32xf32> -> vector<16x128xf32>
    %c0_4 = arith.constant 0 : index
    %c0_5 = arith.constant 0 : index
    %9 = vector.load %arg1[%c0_4, %c0_5] : memref<32x16xf32, #tpu.memory_space<vmem>>, vector<32x16xf32>
    %cst_6 = arith.constant dense<0.000000e+00> : vector<32x128xf32>
    %10 = tpu.matmul %9, %8, %cst_6 {dimension_numbers = #tpu.dot_dimension_numbers<[1], [0], [0], [1], [0, 0, 1, 1], [], []>, precision = #tpu.contract_precision<fp32>} : vector<32x16xf32>, vector<16x128xf32>, vector<32x128xf32> -> vector<32x128xf32>
    %c0_7 = arith.constant 0 : index
    %c0_8 = arith.constant 0 : index
    %c0_9 = arith.constant 0 : index
    %11 = vector.load %arg4[%c0_7, %c0_8, %c0_9] : memref<1x32x128xf32, #tpu.memory_space<vmem>>, vector<1x32x128xf32>
    %12 = vector.shape_cast %11 : vector<1x32x128xf32> to vector<32x128xf32>
    %13 = vector.shape_cast %10 : vector<32x128xf32> to vector<1x32x128xf32>
    tpu.vector_store %arg4[%c0_7, %c0_8, %c0_9], %13 {strides = array<i32>} : memref<1x32x128xf32, #tpu.memory_space<vmem>>, vector<1x32x128xf32>,
    return
  }
  func.func @transform_0(%arg0: i32) -> (i32, i32) {
    %c0_i32 = arith.constant 0 : i32
    %c0_i32_0 = arith.constant 0 : i32
    %c0_i32_1 = arith.constant 0 : i32
    return %c0_i32, %c0_i32_0 : i32, i32
  }
  func.func @transform_1(%arg0: i32) -> (i32, i32) {
    %c0_i32 = arith.constant 0 : i32
    %c0_i32_0 = arith.constant 0 : i32
    %c0_i32_1 = arith.constant 0 : i32
    return %c0_i32, %c0_i32_0 : i32, i32
  }
  func.func @transform_2(%arg0: i32) -> (i32, i32, i32) {
    %c0_i32 = arith.constant 0 : i32
    %c0_i32_0 = arith.constant 0 : i32
    %c0_i32_1 = arith.constant 0 : i32
    return %arg0, %c0_i32, %c0_i32_0 : i32, i32, i32
  }
  func.func @transform_3(%arg0: i32) -> (i32, i32, i32) {
    %c0_i32 = arith.constant 0 : i32
    %c0_i32_0 = arith.constant 0 : i32
    %c0_i32_1 = arith.constant 0 : i32
    return %arg0, %c0_i32, %c0_i32_0 : i32, i32, i32
  }
}

</mosaic_0001>

<llo_original>
// kernel: tpu_custom_call.1
$region0: #{tpu_custom_call.1}
  #allocation0 [shape = 'u32[]', space=smem, size = 0x4, offset = 0x4, fixed_abs, tag = 'smem constant byte address 0x4 - core index']
  #allocation1 [shape = 'u32[144,128]{1,0:T(1,128)}', space=vmem, size = 0x12000, scoped, tag = 'internal scratch']
  %s0 = inlined_call_operand.vmem [shape: f32[32,16], index: 0, kind: input, shape index: {}]
  %s1 = inlined_call_operand.vmem [shape: f32[16,32], index: 1, kind: input, shape index: {}]
  %s2 = inlined_call_operand.hbm [shape: f32[8,16,16], index: 2, kind: input, shape index: {}]
  %s3 = inlined_call_operand.hbm [shape: f32[2,32,128], index: 3, kind: output, shape index: {}]
  %s4 = sld [smem:[#allocation0]]
  $region49: #{tpu_custom_call.1} parent=0
    _
  %s6 = ssub.s32 1, %s4
  %s7 = scalar_select 0, %s6, %s4
  $region1: #{tpu_custom_call.1} parent=0
    #allocation2 [shape = 'u8[65536]{0}', space=vmem, size = 0x10000, scoped, tag = 'input window, operand 2']
    #allocation3 [shape = 's32[2]{0}', space=sflag, size = 0x8, scoped, tag = 'scoped memory for tpu_custom_call.1']
    #allocation4 [shape = 's32[2]{0}', space=sflag, size = 0x8, scoped, tag = 'scoped memory for tpu_custom_call.1']
    #allocation5 [shape = 'u8[32768]{0}', space=vmem, size = 0x8000, scoped, tag = 'output window, operand 0']
    %8 = vsyncpa [#allocation3], 0
    %s9 = scalar_lea.sflag [#allocation3], 1
    %10 = vsyncpa %s9, 0
    %11 = vsyncpa [#allocation4], 0
    %s12 = scalar_lea.sflag [#allocation4], 1
    %13 = vsyncpa %s12, 0
    loop: start=0, step=1, limit=4
    $region2: #{tpu_custom_call.1} parent=1 // loop_pre_header
      _
    $region3: #{tpu_custom_call.1} parent=1 // loop_header
      %s15 = sphi 0, %s19
      %p16 = scmp.ge.s32.totalorder %s15, 4
      %s23 = sphi 0, %s23
      %s25 = sphi 0, %s23
      %s26 = sphi 0, %s25
      %s40 = sphi 0, %s26
      %s44 = sphi 0, %s44
      %s46 = sphi 0, %s44
      %s47 = sphi 0, %s46
      %s61 = sphi 0, %s47
      %s67 = sphi 0, %s69
      %s70 = sphi 0, %s67
      %s71 = sphi 0, %s70
      %s87 = sphi 0, %s71
      %s93 = sphi 0, %s95
      %s96 = sphi 0, %s93
      %s97 = sphi 0, %s96
      %s113 = sphi 0, %s97
    $region4: #{tpu_custom_call.1} parent=1 // loop_header_branch
      %18 = sbr.rel (%p16) target = $region8
    $region5: #{tpu_custom_call.1} parent=1 // loop_body
      %s20 = ssub.s32 %s15, 1
      %s21 = ssub.s32 %s15, 2
      %s22 = sadd.s32 %s15, 1
      %s24 = sadd.s32 %s23, 1
      %p27 = scmp.eq.s32.totalorder %s15, 1
      %p28 = scmp.ne.s32.totalorder %s23, %s25
      %p29 = scmp.eq.s32.totalorder %s15, 0
      %p30 = por %p28, %p29
      %p31 = scmp.ne.s32.totalorder %s23, %s25
      %p32 = scmp.eq.s32.totalorder %s20, 1
      %p33 = por %p31, %p32
      %p34 = scmp.ne.s32.totalorder %s25, %s26
      %p35 = scmp.eq.s32.totalorder %s20, 0
      %p36 = por %p34, %p35
      %p37 = scmp.ne.s32.totalorder %s25, %s26
      %p38 = scmp.eq.s32.totalorder %s21, 1
      %p39 = por %p37, %p38
      %p41 = scmp.ne.s32.totalorder %s26, %s40
      %p42 = scmp.eq.s32.totalorder %s21, 0
      %p43 = por %p41, %p42
      %s45 = sadd.s32 %s44, 1
      %p48 = scmp.eq.s32.totalorder %s15, 1
      %p49 = scmp.ne.s32.totalorder %s44, %s46
      %p50 = scmp.eq.s32.totalorder %s15, 0
      %p51 = por %p49, %p50
      %p52 = scmp.ne.s32.totalorder %s44, %s46
      %p53 = scmp.eq.s32.totalorder %s20, 1
      %p54 = por %p52, %p53
      %p55 = scmp.ne.s32.totalorder %s46, %s47
      %p56 = scmp.eq.s32.totalorder %s20, 0
      %p57 = por %p55, %p56
      %p58 = scmp.ne.s32.totalorder %s46, %s47
      %p59 = scmp.eq.s32.totalorder %s21, 1
      %p60 = por %p58, %p59
      %p62 = scmp.ne.s32.totalorder %s47, %s61
      %p63 = scmp.eq.s32.totalorder %s21, 0
      %p64 = por %p62, %p63
      %s65 = ssub.s32 %s15, %s22
      %p66 = scmp.eq.s32.totalorder %s65, 0
      %s68 = sadd.s32 %s67, 1
      %s69 = scalar_select %p66, %s67, %s68
      %p72 = pneg %p66
      %p73 = scmp.eq.s32.totalorder %s15, 1
      %p74 = por %p72, %p73
      %p75 = scmp.ne.s32.totalorder %s67, %s70
      %p76 = scmp.eq.s32.totalorder %s15, 0
      %p77 = por %p75, %p76
      %p78 = scmp.ne.s32.totalorder %s67, %s70
      %p79 = scmp.eq.s32.totalorder %s20, 1
      %p80 = por %p78, %p79
      %p81 = scmp.ne.s32.totalorder %s70, %s71
      %p82 = scmp.eq.s32.totalorder %s20, 0
      %p83 = por %p81, %p82
      %p84 = scmp.ne.s32.totalorder %s70, %s71
      %p85 = scmp.eq.s32.totalorder %s21, 1
      %p86 = por %p84, %p85
      %p88 = scmp.ne.s32.totalorder %s71, %s87
      %p89 = scmp.eq.s32.totalorder %s21, 0
      %p90 = por %p88, %p89
      %s91 = ssub.s32 %s15, %s22
      %p92 = scmp.eq.s32.totalorder %s91, 0
      %s94 = sadd.s32 %s93, 1
      %s95 = scalar_select %p92, %s93, %s94
      %p98 = pneg %p92
      %p99 = scmp.eq.s32.totalorder %s15, 1
      %p100 = por %p98, %p99
      %p101 = scmp.ne.s32.totalorder %s93, %s96
      %p102 = scmp.eq.s32.totalorder %s15, 0
      %p103 = por %p101, %p102
      %p104 = scmp.ne.s32.totalorder %s93, %s96
      %p105 = scmp.eq.s32.totalorder %s20, 1
      %p106 = por %p104, %p105
      %p107 = scmp.ne.s32.totalorder %s96, %s97
      %p108 = scmp.eq.s32.totalorder %s20, 0
      %p109 = por %p107, %p108
      %p110 = scmp.ne.s32.totalorder %s96, %s97
      %p111 = scmp.eq.s32.totalorder %s21, 1
      %p112 = por %p110, %p111
      %p114 = scmp.ne.s32.totalorder %s97, %s113
      %p115 = scmp.eq.s32.totalorder %s21, 0
      %p116 = por %p114, %p115
      %p117 = scmp.le.s32.totalorder 1, %s15
      %p118 = scmp.lt.s32.totalorder %s15, 3
      %p119 = pnand %p117, %p118
      %p120 = pneg %p119
      // Predicated region
      $region9: #{tpu_custom_call.1} parent=5 // pred_check
        _
      $region10: #{tpu_custom_call.1} parent=5 // pred_check_branch
        %122 = sbr.rel (%p119) target = $region12
      $region11: #{tpu_custom_call.1} parent=5 // pred_region
        %s123 = ssub.s32 %s15, 1
        // Predicated region
        $region13: #{tpu_custom_call.1} parent=11 // pred_check
          %p124 = pneg %p36
        $region14: #{tpu_custom_call.1} parent=11 // pred_check_branch
          %126 = sbr.rel (%p124) target = $region16
        $region15: #{tpu_custom_call.1} parent=11 // pred_region
          _
        $region16: #{tpu_custom_call.1} parent=11 // pred_fallthru
          _
        // Predicated region
        $region17: #{tpu_custom_call.1} parent=11 // pred_check
          %p127 = pneg %p57
        $region18: #{tpu_custom_call.1} parent=11 // pred_check_branch
          %129 = sbr.rel (%p127) target = $region20
        $region19: #{tpu_custom_call.1} parent=11 // pred_region
          _
        $region20: #{tpu_custom_call.1} parent=11 // pred_fallthru
          _
      $region12: #{tpu_custom_call.1} parent=5 // pred_fallthru
        _
      %p130 = scmp.lt.s32.totalorder %s15, 2
      // Predicated region
      $region21: #{tpu_custom_call.1} parent=5 // pred_check
        %p131 = pneg %p130
      $region22: #{tpu_custom_call.1} parent=5 // pred_check_branch
        %133 = sbr.rel (%p131) target = $region24
      $region23: #{tpu_custom_call.1} parent=5 // pred_region
        // Predicated region
        $region25: #{tpu_custom_call.1} parent=23 // pred_check
          %p134 = pneg %p77
        $region26: #{tpu_custom_call.1} parent=23 // pred_check_branch
          %136 = sbr.rel (%p134) target = $region28
        $region27: #{tpu_custom_call.1} parent=23 // pred_region
          %s137 = sand.u32 %s67, 1
          %s138 = scalar_lea.sflag [#allocation3], %s137
          %s139 = sand.u32 %s67, 1
          %s140 = smul.addr %s139, 64
          %s141 = scalar_lea.vmem [#allocation2], %s140
          %s142 = smul.u32 4, %s15
          %s144 = ssub.s32 1024, 1024
          %145 = vsyncadd %s138, %s144
          %s146 = smul.addr %s142, 2
          %s147 = smul.addr %s146, 128
          %s148 = scalar_lea.hbm %s2, %s147
          %s149 = sshll.u32 %s141, 4
          %s150 = int_to_ptr.vmem [resolvable:$true] %s149
          %155 = dma.hbm_to_vmem [thread:$0]  %s148, 1024, %s150, %s138, 128, 128, 8
        $region28: #{tpu_custom_call.1} parent=23 // pred_fallthru
          _
      $region24: #{tpu_custom_call.1} parent=5 // pred_fallthru
        _
      %p156 = scmp.le.s32.totalorder 1, %s15
      %p157 = scmp.lt.s32.totalorder %s15, 3
      %p158 = pnand %p156, %p157
      %p159 = pneg %p158
      // Predicated region
      $region29: #{tpu_custom_call.1} parent=5 // pred_check
        _
      $region30: #{tpu_custom_call.1} parent=5 // pred_check_branch
        %161 = sbr.rel (%p158) target = $region32
      $region31: #{tpu_custom_call.1} parent=5 // pred_region
        %s162 = ssub.s32 %s15, 1
        %s163 = sand.u32 %s70, 1
        %s164 = scalar_lea.sflag [#allocation3], %s163
        %s165 = sand.u32 %s70, 1
        %s166 = smul.addr %s165, 64
        %s167 = scalar_lea.vmem [#allocation2], %s166
        // Predicated region
        $region33: #{tpu_custom_call.1} parent=31 // pred_check
          %p168 = pneg %p83
        $region34: #{tpu_custom_call.1} parent=31 // pred_check_branch
          %170 = sbr.rel (%p168) target = $region36
        $region35: #{tpu_custom_call.1} parent=31 // pred_region
          %171 = dma.done %s164, 1024
        $region36: #{tpu_custom_call.1} parent=31 // pred_fallthru
          _
        %p172 = pneg %p36
        %p173 = pneg %p33
        %p174 = pneg %p57
        %p175 = pneg %p54
        %s176 = sand.u32 %s70, 1
        %s177 = scalar_lea.sflag [#allocation3], %s176
        %s178 = sand.u32 %s70, 1
        %s179 = smul.addr %s178, 64
        %s180 = scalar_lea.vmem [#allocation2], %s179
        %p181 = pneg %p83
        %p182 = pneg %p80
        %p183 = pneg %p109
        %p184 = pneg %p106
        %s185 = sand.u32 %s96, 1
        %s186 = scalar_lea.sflag [#allocation4], %s185
        %s187 = sand.u32 %s96, 1
        %s188 = smul.addr %s187, 32
        %s189 = scalar_lea.vmem [#allocation5], %s188
        %s190 = smul.u32 4, %s20
        %v191 = vld [vmem:[%s167] sm:$0xff]
        %v192 = vld [vmem:[%s167 + $0x8] sm:$0xff]
        %v193 = vld [vmem:[%s167 + $0x10] sm:$0xff]
        %v194 = vld [vmem:[%s167 + $0x18] sm:$0xff]
        %v195 = vld [vmem:[%s167 + $0x20] sm:$0xff]
        %v196 = vld [vmem:[%s167 + $0x28] sm:$0xff]
        %v197 = vld [vmem:[%s167 + $0x30] sm:$0xff]
        %v198 = vld [vmem:[%s167 + $0x38] sm:$0xff]
        %v199 = vld [vmem:[%s1] sm:$0xff]
        %v200 = vld [vmem:[%s1 + $0x8] sm:$0xff]
        %vm201 = vcmask 130048
        %v203 = vsel %vm201, %v191, 0
        %v206 = vsel %vm201, %v192, 0
        %v209 = vsel %vm201, %v193, 0
        %v212 = vsel %vm201, %v194, 0
        %v215 = vsel %vm201, %v195, 0
        %v218 = vsel %vm201, %v196, 0
        %v221 = vsel %vm201, %v197, 0
        %v224 = vsel %vm201, %v198, 0
        %226 = vmatprep.subr.mxu0 0.0
        %v227 = vand.u32 %v199, 4294901760
        %228 = vmatpush1.msra.mxu0 %v227
        %229 = vmatprep.subr.mxu0 0.0
        %v230 = vand.u32 %v200, 4294901760
        %231 = vmatpush1.msra.mxu0 %v230
        %232 = vmatprep.subr.mxu0 0.0
        %233 = vmatpush1.msra.mxu0 0.0
        %234 = vmatprep.subr.mxu0 0.0
        %235 = vmatpush1.msra.mxu0 0.0
        %236 = vmatprep.subr.mxu0 0.0
        %237 = vmatpush1.msra.mxu0 0.0
        %238 = vmatprep.subr.mxu0 0.0
        %239 = vmatpush1.msra.mxu0 0.0
        %240 = vmatprep.subr.mxu0 0.0
        %241 = vmatpush1.msra.mxu0 0.0
        %242 = vmatprep.subr.mxu0 0.0
        %243 = vmatpush1.msra.mxu0 0.0
        %244 = vmatprep.subr.mxu0 0.0
        %245 = vmatpush1.msra.mxu0 0.0
        %246 = vmatprep.subr.mxu0 0.0
        %247 = vmatpush1.msra.mxu0 0.0
        %248 = vmatprep.subr.mxu0 0.0
        %249 = vmatpush1.msra.mxu0 0.0
        %250 = vmatprep.subr.mxu0 0.0
        %251 = vmatpush1.msra.mxu0 0.0
        %252 = vmatprep.subr.mxu0 0.0
        %253 = vmatpush1.msra.mxu0 0.0
        %254 = vmatprep.subr.mxu0 0.0
        %255 = vmatpush1.msra.mxu0 0.0
        %256 = vmatprep.subr.mxu0 0.0
        %257 = vmatpush1.msra.mxu0 0.0
        %258 = vmatprep.subr.mxu0 0.0
        %259 = vmatpush1.msra.mxu0 0.0
        %260 = vmatprep.subr.mxu0 0.0
        %261 = vmatpush1.msra.mxu0 0.0
        %262 = vmatprep.subr.mxu0 0.0
        %263 = vmatpush1.msra.mxu0 0.0
        %264 = vmatprep.subr.mxu0 0.0
        %265 = vmatpush1.msra.mxu0 0.0
        %266 = vmatprep.subr.mxu0 0.0
        %267 = vmatpush1.msra.mxu0 0.0
        %268 = vmatprep.subr.mxu0 0.0
        %269 = vmatpush1.msra.mxu0 0.0
        %270 = vmatprep.subr.mxu0 0.0
        %271 = vmatpush1.msra.mxu0 0.0
        %272 = vmatprep.subr.mxu0 0.0
        %273 = vmatpush1.msra.mxu0 0.0
        %274 = vmatprep.subr.mxu0 0.0
        %275 = vmatpush1.msra.mxu0 0.0
        %276 = vmatprep.subr.mxu0 0.0
        %277 = vmatpush1.msra.mxu0 0.0
        %278 = vmatprep.subr.mxu0 0.0
        %279 = vmatpush1.msra.mxu0 0.0
        %280 = vmatprep.subr.mxu0 0.0
        %281 = vmatpush1.msra.mxu0 0.0
        %282 = vmatprep.subr.mxu0 0.0
        %283 = vmatpush1.msra.mxu0 0.0
        %284 = vmatprep.subr.mxu0 0.0
        %285 = vmatpush1.msra.mxu0 0.0
        %286 = vmatprep.subr.mxu0 0.0
        %287 = vmatpush1.msra.mxu0 0.0
        %288 = vmatprep.subr.mxu0 0.0
        %289 = vmatpush1.msra.mxu0 0.0
        %290 = vmatprep.subr.mxu0 0.0
        %291 = vmatpush1.msra.mxu0 0.0
        %292 = vmatprep.mubr.f32.mxu0 0.0
        %v293 = vand.u32 %v203, 4294901760
        %v294 = vsub.f32 %v203, %v293
        %v295 = vand.u32 %v294, 4294901760
        %v296 = vsub.f32 %v294, %v295
        %v297 = vand.u32 %v296, 4294901760
        %298 = vmatmul.mubr.f32.gmra.mrb[0].mxu0 %v297
        %v299 = vpop.f32.mrb[0].mxu0
        %v300 = vadd.f32 0.0, %v299
        %v301 = vpop.f32.mrb[0].mxu0
        %302 = vmatprep.mubr.f32.mxu0 0.0
        %v303 = vand.u32 %v206, 4294901760
        %v304 = vsub.f32 %v206, %v303
        %v305 = vand.u32 %v304, 4294901760
        %v306 = vsub.f32 %v304, %v305
        %v307 = vand.u32 %v306, 4294901760
        %308 = vmatmul.mubr.f32.gmra.mrb[0].mxu0 %v307
        %v309 = vpop.f32.mrb[0].mxu0
        %v310 = vadd.f32 0.0, %v309
        %v311 = vpop.f32.mrb[0].mxu0
        %312 = vmatprep.mubr.f32.mxu0 0.0
        %v313 = vand.u32 %v209, 4294901760
        %v314 = vsub.f32 %v209, %v313
        %v315 = vand.u32 %v314, 4294901760
        %v316 = vsub.f32 %v314, %v315
        %v317 = vand.u32 %v316, 4294901760
        %318 = vmatmul.mubr.f32.gmra.mrb[0].mxu0 %v317
        %v319 = vpop.f32.mrb[0].mxu0
        %v320 = vadd.f32 0.0, %v319
        %v321 = vpop.f32.mrb[0].mxu0
        %322 = vmatprep.mubr.f32.mxu0 0.0
        %v323 = vand.u32 %v212, 4294901760
        %v324 = vsub.f32 %v212, %v323
        %v325 = vand.u32 %v324, 4294901760
        %v326 = vsub.f32 %v324, %v325
        %v327 = vand.u32 %v326, 4294901760
        %328 = vmatmul.mubr.f32.gmra.mrb[0].mxu0 %v327
        %v329 = vpop.f32.mrb[0].mxu0
        %v330 = vadd.f32 0.0, %v329
        %v331 = vpop.f32.mrb[0].mxu0
        %332 = vmatprep.mubr.f32.mxu0 0.0
        %v333 = vand.u32 %v215, 4294901760
        %v334 = vsub.f32 %v215, %v333
        %v335 = vand.u32 %v334, 4294901760
        %v336 = vsub.f32 %v334, %v335
        %v337 = vand.u32 %v336, 4294901760
        %338 = vmatmul.mubr.f32.gmra.mrb[0].mxu0 %v337
        %v339 = vpop.f32.mrb[0].mxu0
        %v340 = vadd.f32 0.0, %v339
        %v341 = vpop.f32.mrb[0].mxu0
        %342 = vmatprep.mubr.f32.mxu0 0.0
        %v343 = vand.u32 %v218, 4294901760
        %v344 = vsub.f32 %v218, %v343
        %v345 = vand.u32 %v344, 4294901760
        %v346 = vsub.f32 %v344, %v345
        %v347 = vand.u32 %v346, 4294901760
        %348 = vmatmul.mubr.f32.gmra.mrb[0].mxu0 %v347
        %v349 = vpop.f32.mrb[0].mxu0
        %v350 = vadd.f32 0.0, %v349
        %v351 = vpop.f32.mrb[0].mxu0
        %352 = vmatprep.mubr.f32.mxu0 0.0
        %v353 = vand.u32 %v221, 4294901760
        %v354 = vsub.f32 %v221, %v353
        %v355 = vand.u32 %v354, 4294901760
        %v356 = vsub.f32 %v354, %v355
        %v357 = vand.u32 %v356, 4294901760
        %358 = vmatmul.mubr.f32.gmra.mrb[0].mxu0 %v357
        %v359 = vpop.f32.mrb[0].mxu0
        %v360 = vadd.f32 0.0, %v359
        %v361 = vpop.f32.mrb[0].mxu0
        %362 = vmatprep.mubr.f32.mxu0 0.0
        %v363 = vand.u32 %v224, 4294901760
        %v364 = vsub.f32 %v224, %v363
        %v365 = vand.u32 %v364, 4294901760
        %v366 = vsub.f32 %v364, %v365
        %v367 = vand.u32 %v366, 4294901760
        %368 = vmatmul.mubr.f32.gmra.mrb[0].mxu0 %v367
        %v369 = vpop.f32.mrb[0].mxu0
        %v370 = vadd.f32 0.0, %v369
        %v371 = vpop.f32.mrb[0].mxu0
        %372 = vdwg.mxu0
        %373 = vmatprep.subr.mxu0 0.0
        %v374 = vand.u32 %v199, 4294901760
        %v375 = vsub.f32 %v199, %v374
        %v376 = vand.u32 %v375, 4294901760
        %v377 = vsub.f32 %v375, %v376
        %v378 = vand.u32 %v377, 4294901760
        %379 = vmatpush1.msra.mxu0 %v378
        %380 = vmatprep.subr.mxu0 0.0
        %v381 = vand.u32 %v200, 4294901760
        %v382 = vsub.f32 %v200, %v381
        %v383 = vand.u32 %v382, 4294901760
        %v384 = vsub.f32 %v382, %v383
        %v385 = vand.u32 %v384, 4294901760
        %386 = vmatpush1.msra.mxu0 %v385
        %387 = vmatprep.subr.mxu0 0.0
        %388 = vmatpush1.msra.mxu0 0.0
        %389 = vmatprep.subr.mxu0 0.0
        %390 = vmatpush1.msra.mxu0 0.0
        %391 = vmatprep.subr.mxu0 0.0
        %392 = vmatpush1.msra.mxu0 0.0
        %393 = vmatprep.subr.mxu0 0.0
        %394 = vmatpush1.msra.mxu0 0.0
        %395 = vmatprep.subr.mxu0 0.0
        %396 = vmatpush1.msra.mxu0 0.0
        %397 = vmatprep.subr.mxu0 0.0
        %398 = vmatpush1.msra.mxu0 0.0
        %399 = vmatprep.subr.mxu0 0.0
        %400 = vmatpush1.msra.mxu0 0.0
        %401 = vmatprep.subr.mxu0 0.0
        %402 = vmatpush1.msra.mxu0 0.0
        %403 = vmatprep.subr.mxu0 0.0
        %404 = vmatpush1.msra.mxu0 0.0
        %405 = vmatprep.subr.mxu0 0.0
        %406 = vmatpush1.msra.mxu0 0.0
        %407 = vmatprep.subr.mxu0 0.0
        %408 = vmatpush1.msra.mxu0 0.0
        %409 = vmatprep.subr.mxu0 0.0
        %410 = vmatpush1.msra.mxu0 0.0
        %411 = vmatprep.subr.mxu0 0.0
        %412 = vmatpush1.msra.mxu0 0.0
        %413 = vmatprep.subr.mxu0 0.0
        %414 = vmatpush1.msra.mxu0 0.0
        %415 = vmatprep.subr.mxu0 0.0
        %416 = vmatpush1.msra.mxu0 0.0
        %417 = vmatprep.subr.mxu0 0.0
        %418 = vmatpush1.msra.mxu0 0.0
        %419 = vmatprep.subr.mxu0 0.0
        %420 = vmatpush1.msra.mxu0 0.0
        %421 = vmatprep.subr.mxu0 0.0
        %422 = vmatpush1.msra.mxu0 0.0
        %423 = vmatprep.subr.mxu0 0.0
        %424 = vmatpush1.msra.mxu0 0.0
        %425 = vmatprep.subr.mxu0 0.0
        %426 = vmatpush1.msra.mxu0 0.0
        %427 = vmatprep.subr.mxu0 0.0
        %428 = vmatpush1.msra.mxu0 0.0
        %429 = vmatprep.subr.mxu0 0.0
        %430 = vmatpush1.msra.mxu0 0.0
        %431 = vmatprep.subr.mxu0 0.0
        %432 = vmatpush1.msra.mxu0 0.0
        %433 = vmatprep.subr.mxu0 0.0
        %434 = vmatpush1.msra.mxu0 0.0
        %435 = vmatprep.subr.mxu0 0.0
        %436 = vmatpush1.msra.mxu0 0.0
        %437 = vmatprep.subr.mxu0 0.0
        %438 = vmatpush1.msra.mxu0 0.0
        %439 = vmatprep.subr.mxu0 0.0
        %440 = vmatpush1.msra.mxu0 0.0
        %441 = vmatprep.subr.mxu0 0.0
        %442 = vmatpush1.msra.mxu0 0.0
        %443 = vmatprep.subr.mxu0 0.0
        %444 = vmatpush1.msra.mxu0 0.0
        %445 = vmatprep.subr.mxu0 0.0
        %446 = vmatpush1.msra.mxu0 0.0
        %447 = vmatprep.mubr.f32.mxu0 0.0
        %v448 = vand.u32 %v203, 4294901760
        %449 = vmatmul.mubr.f32.gmra.mrb[0].mxu0 %v448
        %v450 = vpop.f32.mrb[0].mxu0
        %v451 = vadd.f32 %v300, %v450
        %v452 = vpop.f32.mrb[0].mxu0
        %453 = vmatprep.mubr.f32.mxu0 0.0
        %v454 = vand.u32 %v206, 4294901760
        %455 = vmatmul.mubr.f32.gmra.mrb[0].mxu0 %v454
        %v456 = vpop.f32.mrb[0].mxu0
        %v457 = vadd.f32 %v310, %v456
        %v458 = vpop.f32.mrb[0].mxu0
        %459 = vmatprep.mubr.f32.mxu0 0.0
        %v460 = vand.u32 %v209, 4294901760
        %461 = vmatmul.mubr.f32.gmra.mrb[0].mxu0 %v460
        %v462 = vpop.f32.mrb[0].mxu0
        %v463 = vadd.f32 %v320, %v462
        %v464 = vpop.f32.mrb[0].mxu0
        %465 = vmatprep.mubr.f32.mxu0 0.0
        %v466 = vand.u32 %v212, 4294901760
        %467 = vmatmul.mubr.f32.gmra.mrb[0].mxu0 %v466
        %v468 = vpop.f32.mrb[0].mxu0
        %v469 = vadd.f32 %v330, %v468
        %v470 = vpop.f32.mrb[0].mxu0
        %471 = vmatprep.mubr.f32.mxu0 0.0
        %v472 = vand.u32 %v215, 4294901760
        %473 = vmatmul.mubr.f32.gmra.mrb[0].mxu0 %v472
        %v474 = vpop.f32.mrb[0].mxu0
        %v475 = vadd.f32 %v340, %v474
        %v476 = vpop.f32.mrb[0].mxu0
        %477 = vmatprep.mubr.f32.mxu0 0.0
        %v478 = vand.u32 %v218, 4294901760
        %479 = vmatmul.mubr.f32.gmra.mrb[0].mxu0 %v478
        %v480 = vpop.f32.mrb[0].mxu0
        %v481 = vadd.f32 %v350, %v480
        %v482 = vpop.f32.mrb[0].mxu0
        %483 = vmatprep.mubr.f32.mxu0 0.0
        %v484 = vand.u32 %v221, 4294901760
        %485 = vmatmul.mubr.f32.gmra.mrb[0].mxu0 %v484
        %v486 = vpop.f32.mrb[0].mxu0
        %v487 = vadd.f32 %v360, %v486
        %v488 = vpop.f32.mrb[0].mxu0
        %489 = vmatprep.mubr.f32.mxu0 0.0
        %v490 = vand.u32 %v224, 4294901760
        %491 = vmatmul.mubr.f32.gmra.mrb[0].mxu0 %v490
        %v492 = vpop.f32.mrb[0].mxu0
        %v493 = vadd.f32 %v370, %v492
        %v494 = vpop.f32.mrb[0].mxu0
        %495 = vdwg.mxu0
        %496 = vmatprep.subr.mxu0 0.0
        %v497 = vand.u32 %v199, 4294901760
        %v498 = vsub.f32 %v199, %v497
        %499 = vmatpush1.msra.mxu0 %v498
        %500 = vmatprep.subr.mxu0 0.0
        %v501 = vand.u32 %v200, 4294901760
        %v502 = vsub.f32 %v200, %v501
        %503 = vmatpush1.msra.mxu0 %v502
        %504 = vmatprep.subr.mxu0 0.0
        %505 = vmatpush1.msra.mxu0 0.0
        %506 = vmatprep.subr.mxu0 0.0
        %507 = vmatpush1.msra.mxu0 0.0
        %508 = vmatprep.subr.mxu0 0.0
        %509 = vmatpush1.msra.mxu0 0.0
        %510 = vmatprep.subr.mxu0 0.0
        %511 = vmatpush1.msra.mxu0 0.0
        %512 = vmatprep.subr.mxu0 0.0
        %513 = vmatpush1.msra.mxu0 0.0
        %514 = vmatprep.subr.mxu0 0.0
        %515 = vmatpush1.msra.mxu0 0.0
        %516 = vmatprep.subr.mxu0 0.0
        %517 = vmatpush1.msra.mxu0 0.0
        %518 = vmatprep.subr.mxu0 0.0
        %519 = vmatpush1.msra.mxu0 0.0
        %520 = vmatprep.subr.mxu0 0.0
        %521 = vmatpush1.msra.mxu0 0.0
        %522 = vmatprep.subr.mxu0 0.0
        %523 = vmatpush1.msra.mxu0 0.0
        %524 = vmatprep.subr.mxu0 0.0
        %525 = vmatpush1.msra.mxu0 0.0
        %526 = vmatprep.subr.mxu0 0.0
        %527 = vmatpush1.msra.mxu0 0.0
        %528 = vmatprep.subr.mxu0 0.0
        %529 = vmatpush1.msra.mxu0 0.0
        %530 = vmatprep.subr.mxu0 0.0
        %531 = vmatpush1.msra.mxu0 0.0
        %532 = vmatprep.subr.mxu0 0.0
        %533 = vmatpush1.msra.mxu0 0.0
        %534 = vmatprep.subr.mxu0 0.0
        %535 = vmatpush1.msra.mxu0 0.0
        %536 = vmatprep.subr.mxu0 0.0
        %537 = vmatpush1.msra.mxu0 0.0
        %538 = vmatprep.subr.mxu0 0.0
        %539 = vmatpush1.msra.mxu0 0.0
        %540 = vmatprep.subr.mxu0 0.0
        %541 = vmatpush1.msra.mxu0 0.0
        %542 = vmatprep.subr.mxu0 0.0
        %543 = vmatpush1.msra.mxu0 0.0
        %544 = vmatprep.subr.mxu0 0.0
        %545 = vmatpush1.msra.mxu0 0.0
        %546 = vmatprep.subr.mxu0 0.0
        %547 = vmatpush1.msra.mxu0 0.0
        %548 = vmatprep.subr.mxu0 0.0
        %549 = vmatpush1.msra.mxu0 0.0
        %550 = vmatprep.subr.mxu0 0.0
        %551 = vmatpush1.msra.mxu0 0.0
        %552 = vmatprep.subr.mxu0 0.0
        %553 = vmatpush1.msra.mxu0 0.0
        %554 = vmatprep.subr.mxu0 0.0
        %555 = vmatpush1.msra.mxu0 0.0
        %556 = vmatprep.subr.mxu0 0.0
        %557 = vmatpush1.msra.mxu0 0.0
        %558 = vmatprep.subr.mxu0 0.0
        %559 = vmatpush1.msra.mxu0 0.0
        %560 = vmatprep.subr.mxu0 0.0
        %561 = vmatpush1.msra.mxu0 0.0
        %562 = vmatprep.subr.mxu0 0.0
        %563 = vmatpush1.msra.mxu0 0.0
        %564 = vmatprep.mubr.f32.mxu0 0.0
        %v565 = vand.u32 %v203, 4294901760
        %v566 = vsub.f32 %v203, %v565
        %567 = vmatmul.mubr.f32.gmra.mrb[0].mxu0 %v566
        %v568 = vpop.f32.mrb[0].mxu0
        %v569 = vadd.f32 %v451, %v568
        %v570 = vpop.f32.mrb[0].mxu0
        %571 = vmatprep.mubr.f32.mxu0 0.0
        %v572 = vand.u32 %v206, 4294901760
        %v573 = vsub.f32 %v206, %v572
        %574 = vmatmul.mubr.f32.gmra.mrb[0].mxu0 %v573
        %v575 = vpop.f32.mrb[0].mxu0
        %v576 = vadd.f32 %v457, %v575
        %v577 = vpop.f32.mrb[0].mxu0
        %578 = vmatprep.mubr.f32.mxu0 0.0
        %v579 = vand.u32 %v209, 4294901760
        %v580 = vsub.f32 %v209, %v579
        %581 = vmatmul.mubr.f32.gmra.mrb[0].mxu0 %v580
        %v582 = vpop.f32.mrb[0].mxu0
        %v583 = vadd.f32 %v463, %v582
        %v584 = vpop.f32.mrb[0].mxu0
        %585 = vmatprep.mubr.f32.mxu0 0.0
        %v586 = vand.u32 %v212, 4294901760
        %v587 = vsub.f32 %v212, %v586
        %588 = vmatmul.mubr.f32.gmra.mrb[0].mxu0 %v587
        %v589 = vpop.f32.mrb[0].mxu0
        %v590 = vadd.f32 %v469, %v589
        %v591 = vpop.f32.mrb[0].mxu0
        %592 = vmatprep.mubr.f32.mxu0 0.0
        %v593 = vand.u32 %v215, 4294901760
        %v594 = vsub.f32 %v215, %v593
        %595 = vmatmul.mubr.f32.gmra.mrb[0].mxu0 %v594
        %v596 = vpop.f32.mrb[0].mxu0
        %v597 = vadd.f32 %v475, %v596
        %v598 = vpop.f32.mrb[0].mxu0
        %599 = vmatprep.mubr.f32.mxu0 0.0
        %v600 = vand.u32 %v218, 4294901760
        %v601 = vsub.f32 %v218, %v600
        %602 = vmatmul.mubr.f32.gmra.mrb[0].mxu0 %v601
        %v603 = vpop.f32.mrb[0].mxu0
        %v604 = vadd.f32 %v481, %v603
        %v605 = vpop.f32.mrb[0].mxu0
        %606 = vmatprep.mubr.f32.mxu0 0.0
        %v607 = vand.u32 %v221, 4294901760
        %v608 = vsub.f32 %v221, %v607
        %609 = vmatmul.mubr.f32.gmra.mrb[0].mxu0 %v608
        %v610 = vpop.f32.mrb[0].mxu0
        %v611 = vadd.f32 %v487, %v610
        %v612 = vpop.f32.mrb[0].mxu0
        %613 = vmatprep.mubr.f32.mxu0 0.0
        %v614 = vand.u32 %v224, 4294901760
        %v615 = vsub.f32 %v224, %v614
        %616 = vmatmul.mubr.f32.gmra.mrb[0].mxu0 %v615
        %v617 = vpop.f32.mrb[0].mxu0
        %v618 = vadd.f32 %v493, %v617
        %v619 = vpop.f32.mrb[0].mxu0
        %620 = vdwg.mxu0
        %621 = vmatprep.subr.mxu0 0.0
        %v622 = vand.u32 %v199, 4294901760
        %623 = vmatpush1.msra.mxu0 %v622
        %624 = vmatprep.subr.mxu0 0.0
        %v625 = vand.u32 %v200, 4294901760
        %626 = vmatpush1.msra.mxu0 %v625
        %627 = vmatprep.subr.mxu0 0.0
        %628 = vmatpush1.msra.mxu0 0.0
        %629 = vmatprep.subr.mxu0 0.0
        %630 = vmatpush1.msra.mxu0 0.0
        %631 = vmatprep.subr.mxu0 0.0
        %632 = vmatpush1.msra.mxu0 0.0
        %633 = vmatprep.subr.mxu0 0.0
        %634 = vmatpush1.msra.mxu0 0.0
        %635 = vmatprep.subr.mxu0 0.0
        %636 = vmatpush1.msra.mxu0 0.0
        %637 = vmatprep.subr.mxu0 0.0
        %638 = vmatpush1.msra.mxu0 0.0
        %639 = vmatprep.subr.mxu0 0.0
        %640 = vmatpush1.msra.mxu0 0.0
        %641 = vmatprep.subr.mxu0 0.0
        %642 = vmatpush1.msra.mxu0 0.0
        %643 = vmatprep.subr.mxu0 0.0
        %644 = vmatpush1.msra.mxu0 0.0
        %645 = vmatprep.subr.mxu0 0.0
        %646 = vmatpush1.msra.mxu0 0.0
        %647 = vmatprep.subr.mxu0 0.0
        %648 = vmatpush1.msra.mxu0 0.0
        %649 = vmatprep.subr.mxu0 0.0
        %650 = vmatpush1.msra.mxu0 0.0
        %651 = vmatprep.subr.mxu0 0.0
        %652 = vmatpush1.msra.mxu0 0.0
        %653 = vmatprep.subr.mxu0 0.0
        %654 = vmatpush1.msra.mxu0 0.0
        %655 = vmatprep.subr.mxu0 0.0
        %656 = vmatpush1.msra.mxu0 0.0
        %657 = vmatprep.subr.mxu0 0.0
        %658 = vmatpush1.msra.mxu0 0.0
        %659 = vmatprep.subr.mxu0 0.0
        %660 = vmatpush1.msra.mxu0 0.0
        %661 = vmatprep.subr.mxu0 0.0
        %662 = vmatpush1.msra.mxu0 0.0
        %663 = vmatprep.subr.mxu0 0.0
        %664 = vmatpush1.msra.mxu0 0.0
        %665 = vmatprep.subr.mxu0 0.0
        %666 = vmatpush1.msra.mxu0 0.0
        %667 = vmatprep.subr.mxu0 0.0
        %668 = vmatpush1.msra.mxu0 0.0
        %669 = vmatprep.subr.mxu0 0.0
        %670 = vmatpush1.msra.mxu0 0.0
        %671 = vmatprep.subr.mxu0 0.0
        %672 = vmatpush1.msra.mxu0 0.0
        %673 = vmatprep.subr.mxu0 0.0
        %674 = vmatpush1.msra.mxu0 0.0
        %675 = vmatprep.subr.mxu0 0.0
        %676 = vmatpush1.msra.mxu0 0.0
        %677 = vmatprep.subr.mxu0 0.0
        %678 = vmatpush1.msra.mxu0 0.0
        %679 = vmatprep.subr.mxu0 0.0
        %680 = vmatpush1.msra.mxu0 0.0
        %681 = vmatprep.subr.mxu0 0.0
        %682 = vmatpush1.msra.mxu0 0.0
        %683 = vmatprep.subr.mxu0 0.0
        %684 = vmatpush1.msra.mxu0 0.0
        %685 = vmatprep.subr.mxu0 0.0
        %686 = vmatpush1.msra.mxu0 0.0
        %687 = vmatprep.mubr.f32.mxu0 0.0
        %v688 = vand.u32 %v203, 4294901760
        %v689 = vsub.f32 %v203, %v688
        %v690 = vand.u32 %v689, 4294901760
        %691 = vmatmul.mubr.f32.gmra.mrb[0].mxu0 %v690
        %v692 = vpop.f32.mrb[0].mxu0
        %v693 = vadd.f32 %v569, %v692
        %v694 = vpop.f32.mrb[0].mxu0
        %695 = vmatprep.mubr.f32.mxu0 0.0
        %v696 = vand.u32 %v206, 4294901760
        %v697 = vsub.f32 %v206, %v696
        %v698 = vand.u32 %v697, 4294901760
        %699 = vmatmul.mubr.f32.gmra.mrb[0].mxu0 %v698
        %v700 = vpop.f32.mrb[0].mxu0
        %v701 = vadd.f32 %v576, %v700
        %v702 = vpop.f32.mrb[0].mxu0
        %703 = vmatprep.mubr.f32.mxu0 0.0
        %v704 = vand.u32 %v209, 4294901760
        %v705 = vsub.f32 %v209, %v704
        %v706 = vand.u32 %v705, 4294901760
        %707 = vmatmul.mubr.f32.gmra.mrb[0].mxu0 %v706
        %v708 = vpop.f32.mrb[0].mxu0
        %v709 = vadd.f32 %v583, %v708
        %v710 = vpop.f32.mrb[0].mxu0
        %711 = vmatprep.mubr.f32.mxu0 0.0
        %v712 = vand.u32 %v212, 4294901760
        %v713 = vsub.f32 %v212, %v712
        %v714 = vand.u32 %v713, 4294901760
        %715 = vmatmul.mubr.f32.gmra.mrb[0].mxu0 %v714
        %v716 = vpop.f32.mrb[0].mxu0
        %v717 = vadd.f32 %v590, %v716
        %v718 = vpop.f32.mrb[0].mxu0
        %719 = vmatprep.mubr.f32.mxu0 0.0
        %v720 = vand.u32 %v215, 4294901760
        %v721 = vsub.f32 %v215, %v720
        %v722 = vand.u32 %v721, 4294901760
        %723 = vmatmul.mubr.f32.gmra.mrb[0].mxu0 %v722
        %v724 = vpop.f32.mrb[0].mxu0
        %v725 = vadd.f32 %v597, %v724
        %v726 = vpop.f32.mrb[0].mxu0
        %727 = vmatprep.mubr.f32.mxu0 0.0
        %v728 = vand.u32 %v218, 4294901760
        %v729 = vsub.f32 %v218, %v728
        %v730 = vand.u32 %v729, 4294901760
        %731 = vmatmul.mubr.f32.gmra.mrb[0].mxu0 %v730
        %v732 = vpop.f32.mrb[0].mxu0
        %v733 = vadd.f32 %v604, %v732
        %v734 = vpop.f32.mrb[0].mxu0
        %735 = vmatprep.mubr.f32.mxu0 0.0
        %v736 = vand.u32 %v221, 4294901760
        %v737 = vsub.f32 %v221, %v736
        %v738 = vand.u32 %v737, 4294901760
        %739 = vmatmul.mubr.f32.gmra.mrb[0].mxu0 %v738
        %v740 = vpop.f32.mrb[0].mxu0
        %v741 = vadd.f32 %v611, %v740
        %v742 = vpop.f32.mrb[0].mxu0
        %743 = vmatprep.mubr.f32.mxu0 0.0
        %v744 = vand.u32 %v224, 4294901760
        %v745 = vsub.f32 %v224, %v744
        %v746 = vand.u32 %v745, 4294901760
        %747 = vmatmul.mubr.f32.gmra.mrb[0].mxu0 %v746
        %v748 = vpop.f32.mrb[0].mxu0
        %v749 = vadd.f32 %v618, %v748
        %v750 = vpop.f32.mrb[0].mxu0
        %751 = vdwg.mxu0
        %752 = vmatprep.subr.mxu0 0.0
        %v753 = vand.u32 %v199, 4294901760
        %v754 = vsub.f32 %v199, %v753
        %v755 = vand.u32 %v754, 4294901760
        %756 = vmatpush1.msra.mxu0 %v755
        %757 = vmatprep.subr.mxu0 0.0
        %v758 = vand.u32 %v200, 4294901760
        %v759 = vsub.f32 %v200, %v758
        %v760 = vand.u32 %v759, 4294901760
        %761 = vmatpush1.msra.mxu0 %v760
        %762 = vmatprep.subr.mxu0 0.0
        %763 = vmatpush1.msra.mxu0 0.0
        %764 = vmatprep.subr.mxu0 0.0
        %765 = vmatpush1.msra.mxu0 0.0
        %766 = vmatprep.subr.mxu0 0.0
        %767 = vmatpush1.msra.mxu0 0.0
        %768 = vmatprep.subr.mxu0 0.0
        %769 = vmatpush1.msra.mxu0 0.0
        %770 = vmatprep.subr.mxu0 0.0
        %771 = vmatpush1.msra.mxu0 0.0
        %772 = vmatprep.subr.mxu0 0.0
        %773 = vmatpush1.msra.mxu0 0.0
        %774 = vmatprep.subr.mxu0 0.0
        %775 = vmatpush1.msra.mxu0 0.0
        %776 = vmatprep.subr.mxu0 0.0
        %777 = vmatpush1.msra.mxu0 0.0
        %778 = vmatprep.subr.mxu0 0.0
        %779 = vmatpush1.msra.mxu0 0.0
        %780 = vmatprep.subr.mxu0 0.0
        %781 = vmatpush1.msra.mxu0 0.0
        %782 = vmatprep.subr.mxu0 0.0
        %783 = vmatpush1.msra.mxu0 0.0
        %784 = vmatprep.subr.mxu0 0.0
        %785 = vmatpush1.msra.mxu0 0.0
        %786 = vmatprep.subr.mxu0 0.0
        %787 = vmatpush1.msra.mxu0 0.0
        %788 = vmatprep.subr.mxu0 0.0
        %789 = vmatpush1.msra.mxu0 0.0
        %790 = vmatprep.subr.mxu0 0.0
        %791 = vmatpush1.msra.mxu0 0.0
        %792 = vmatprep.subr.mxu0 0.0
        %793 = vmatpush1.msra.mxu0 0.0
        %794 = vmatprep.subr.mxu0 0.0
        %795 = vmatpush1.msra.mxu0 0.0
        %796 = vmatprep.subr.mxu0 0.0
        %797 = vmatpush1.msra.mxu0 0.0
        %798 = vmatprep.subr.mxu0 0.0
        %799 = vmatpush1.msra.mxu0 0.0
        %800 = vmatprep.subr.mxu0 0.0
        %801 = vmatpush1.msra.mxu0 0.0
        %802 = vmatprep.subr.mxu0 0.0
        %803 = vmatpush1.msra.mxu0 0.0
        %804 = vmatprep.subr.mxu0 0.0
        %805 = vmatpush1.msra.mxu0 0.0
        %806 = vmatprep.subr.mxu0 0.0
        %807 = vmatpush1.msra.mxu0 0.0
        %808 = vmatprep.subr.mxu0 0.0
        %809 = vmatpush1.msra.mxu0 0.0
        %810 = vmatprep.subr.mxu0 0.0
        %811 = vmatpush1.msra.mxu0 0.0
        %812 = vmatprep.subr.mxu0 0.0
        %813 = vmatpush1.msra.mxu0 0.0
        %814 = vmatprep.subr.mxu0 0.0
        %815 = vmatpush1.msra.mxu0 0.0
        %816 = vmatprep.subr.mxu0 0.0
        %817 = vmatpush1.msra.mxu0 0.0
        %818 = vmatprep.subr.mxu0 0.0
        %819 = vmatpush1.msra.mxu0 0.0
        %820 = vmatprep.subr.mxu0 0.0
        %821 = vmatpush1.msra.mxu0 0.0
        %822 = vmatprep.mubr.f32.mxu0 0.0
        %v823 = vand.u32 %v203, 4294901760
        %824 = vmatmul.mubr.f32.gmra.mrb[0].mxu0 %v823
        %v825 = vpop.f32.mrb[0].mxu0
        %v826 = vadd.f32 %v693, %v825
        %v827 = vpop.f32.mrb[0].mxu0
        %828 = vmatprep.mubr.f32.mxu0 0.0
        %v829 = vand.u32 %v206, 4294901760
        %830 = vmatmul.mubr.f32.gmra.mrb[0].mxu0 %v829
        %v831 = vpop.f32.mrb[0].mxu0
        %v832 = vadd.f32 %v701, %v831
        %v833 = vpop.f32.mrb[0].mxu0
        %834 = vmatprep.mubr.f32.mxu0 0.0
        %v835 = vand.u32 %v209, 4294901760
        %836 = vmatmul.mubr.f32.gmra.mrb[0].mxu0 %v835
        %v837 = vpop.f32.mrb[0].mxu0
        %v838 = vadd.f32 %v709, %v837
        %v839 = vpop.f32.mrb[0].mxu0
        %840 = vmatprep.mubr.f32.mxu0 0.0
        %v841 = vand.u32 %v212, 4294901760
        %842 = vmatmul.mubr.f32.gmra.mrb[0].mxu0 %v841
        %v843 = vpop.f32.mrb[0].mxu0
        %v844 = vadd.f32 %v717, %v843
        %v845 = vpop.f32.mrb[0].mxu0
        %846 = vmatprep.mubr.f32.mxu0 0.0
        %v847 = vand.u32 %v215, 4294901760
        %848 = vmatmul.mubr.f32.gmra.mrb[0].mxu0 %v847
        %v849 = vpop.f32.mrb[0].mxu0
        %v850 = vadd.f32 %v725, %v849
        %v851 = vpop.f32.mrb[0].mxu0
        %852 = vmatprep.mubr.f32.mxu0 0.0
        %v853 = vand.u32 %v218, 4294901760
        %854 = vmatmul.mubr.f32.gmra.mrb[0].mxu0 %v853
        %v855 = vpop.f32.mrb[0].mxu0
        %v856 = vadd.f32 %v733, %v855
        %v857 = vpop.f32.mrb[0].mxu0
        %858 = vmatprep.mubr.f32.mxu0 0.0
        %v859 = vand.u32 %v221, 4294901760
        %860 = vmatmul.mubr.f32.gmra.mrb[0].mxu0 %v859
        %v861 = vpop.f32.mrb[0].mxu0
        %v862 = vadd.f32 %v741, %v861
        %v863 = vpop.f32.mrb[0].mxu0
        %864 = vmatprep.mubr.f32.mxu0 0.0
        %v865 = vand.u32 %v224, 4294901760
        %866 = vmatmul.mubr.f32.gmra.mrb[0].mxu0 %v865
        %v867 = vpop.f32.mrb[0].mxu0
        %v868 = vadd.f32 %v749, %v867
        %v869 = vpop.f32.mrb[0].mxu0
        %870 = vdwg.mxu0
        %871 = vmatprep.subr.mxu0 0.0
        %v872 = vand.u32 %v199, 4294901760
        %873 = vmatpush1.msra.mxu0 %v872
        %874 = vmatprep.subr.mxu0 0.0
        %v875 = vand.u32 %v200, 4294901760
        %876 = vmatpush1.msra.mxu0 %v875
        %877 = vmatprep.subr.mxu0 0.0
        %878 = vmatpush1.msra.mxu0 0.0
        %879 = vmatprep.subr.mxu0 0.0
        %880 = vmatpush1.msra.mxu0 0.0
        %881 = vmatprep.subr.mxu0 0.0
        %882 = vmatpush1.msra.mxu0 0.0
        %883 = vmatprep.subr.mxu0 0.0
        %884 = vmatpush1.msra.mxu0 0.0
        %885 = vmatprep.subr.mxu0 0.0
        %886 = vmatpush1.msra.mxu0 0.0
        %887 = vmatprep.subr.mxu0 0.0
        %888 = vmatpush1.msra.mxu0 0.0
        %889 = vmatprep.subr.mxu0 0.0
        %890 = vmatpush1.msra.mxu0 0.0
        %891 = vmatprep.subr.mxu0 0.0
        %892 = vmatpush1.msra.mxu0 0.0
        %893 = vmatprep.subr.mxu0 0.0
        %894 = vmatpush1.msra.mxu0 0.0
        %895 = vmatprep.subr.mxu0 0.0
        %896 = vmatpush1.msra.mxu0 0.0
        %897 = vmatprep.subr.mxu0 0.0
        %898 = vmatpush1.msra.mxu0 0.0
        %899 = vmatprep.subr.mxu0 0.0
        %900 = vmatpush1.msra.mxu0 0.0
        %901 = vmatprep.subr.mxu0 0.0
        %902 = vmatpush1.msra.mxu0 0.0
        %903 = vmatprep.subr.mxu0 0.0
        %904 = vmatpush1.msra.mxu0 0.0
        %905 = vmatprep.subr.mxu0 0.0
        %906 = vmatpush1.msra.mxu0 0.0
        %907 = vmatprep.subr.mxu0 0.0
        %908 = vmatpush1.msra.mxu0 0.0
        %909 = vmatprep.subr.mxu0 0.0
        %910 = vmatpush1.msra.mxu0 0.0
        %911 = vmatprep.subr.mxu0 0.0
        %912 = vmatpush1.msra.mxu0 0.0
        %913 = vmatprep.subr.mxu0 0.0
        %914 = vmatpush1.msra.mxu0 0.0
        %915 = vmatprep.subr.mxu0 0.0
        %916 = vmatpush1.msra.mxu0 0.0
        %917 = vmatprep.subr.mxu0 0.0
        %918 = vmatpush1.msra.mxu0 0.0
        %919 = vmatprep.subr.mxu0 0.0
        %920 = vmatpush1.msra.mxu0 0.0
        %921 = vmatprep.subr.mxu0 0.0
        %922 = vmatpush1.msra.mxu0 0.0
        %923 = vmatprep.subr.mxu0 0.0
        %924 = vmatpush1.msra.mxu0 0.0
        %925 = vmatprep.subr.mxu0 0.0
        %926 = vmatpush1.msra.mxu0 0.0
        %927 = vmatprep.subr.mxu0 0.0
        %928 = vmatpush1.msra.mxu0 0.0
        %929 = vmatprep.subr.mxu0 0.0
        %930 = vmatpush1.msra.mxu0 0.0
        %931 = vmatprep.subr.mxu0 0.0
        %932 = vmatpush1.msra.mxu0 0.0
        %933 = vmatprep.subr.mxu0 0.0
        %934 = vmatpush1.msra.mxu0 0.0
        %935 = vmatprep.subr.mxu0 0.0
        %936 = vmatpush1.msra.mxu0 0.0
        %937 = vmatprep.mubr.f32.mxu0 0.0
        %v938 = vand.u32 %v203, 4294901760
        %939 = vmatmul.mubr.f32.gmra.mrb[0].mxu0 %v938
        %v940 = vpop.f32.mrb[0].mxu0
        %v941 = vadd.f32 %v826, %v940
        %v942 = vpop.f32.mrb[0].mxu0
        %943 = vmatprep.mubr.f32.mxu0 0.0
        %v944 = vand.u32 %v206, 4294901760
        %945 = vmatmul.mubr.f32.gmra.mrb[0].mxu0 %v944
        %v946 = vpop.f32.mrb[0].mxu0
        %v947 = vadd.f32 %v832, %v946
        %v948 = vpop.f32.mrb[0].mxu0
        %949 = vmatprep.mubr.f32.mxu0 0.0
        %v950 = vand.u32 %v209, 4294901760
        %951 = vmatmul.mubr.f32.gmra.mrb[0].mxu0 %v950
        %v952 = vpop.f32.mrb[0].mxu0
        %v953 = vadd.f32 %v838, %v952
        %v954 = vpop.f32.mrb[0].mxu0
        %955 = vmatprep.mubr.f32.mxu0 0.0
        %v956 = vand.u32 %v212, 4294901760
        %957 = vmatmul.mubr.f32.gmra.mrb[0].mxu0 %v956
        %v958 = vpop.f32.mrb[0].mxu0
        %v959 = vadd.f32 %v844, %v958
        %v960 = vpop.f32.mrb[0].mxu0
        %961 = vmatprep.mubr.f32.mxu0 0.0
        %v962 = vand.u32 %v215, 4294901760
        %963 = vmatmul.mubr.f32.gmra.mrb[0].mxu0 %v962
        %v964 = vpop.f32.mrb[0].mxu0
        %v965 = vadd.f32 %v850, %v964
        %v966 = vpop.f32.mrb[0].mxu0
        %967 = vmatprep.mubr.f32.mxu0 0.0
        %v968 = vand.u32 %v218, 4294901760
        %969 = vmatmul.mubr.f32.gmra.mrb[0].mxu0 %v968
        %v970 = vpop.f32.mrb[0].mxu0
        %v971 = vadd.f32 %v856, %v970
        %v972 = vpop.f32.mrb[0].mxu0
        %973 = vmatprep.mubr.f32.mxu0 0.0
        %v974 = vand.u32 %v221, 4294901760
        %975 = vmatmul.mubr.f32.gmra.mrb[0].mxu0 %v974
        %v976 = vpop.f32.mrb[0].mxu0
        %v977 = vadd.f32 %v862, %v976
        %v978 = vpop.f32.mrb[0].mxu0
        %979 = vmatprep.mubr.f32.mxu0 0.0
        %v980 = vand.u32 %v224, 4294901760
        %981 = vmatmul.mubr.f32.gmra.mrb[0].mxu0 %v980
        %v982 = vpop.f32.mrb[0].mxu0
        %v983 = vadd.f32 %v868, %v982
        %v984 = vpop.f32.mrb[0].mxu0
        %985 = vdwg.mxu0
        %988 = vrot.lane.b32.xlu0 %v953, 32
        %v989 = vpop.permute.xlu0 %988
        %990 = vrot.lane.b32.xlu0 %v959, 32
        %v991 = vpop.permute.xlu0 %990
        %996 = vrot.lane.b32.xlu0 %v965, 64
        %v997 = vpop.permute.xlu0 %996
        %998 = vrot.lane.b32.xlu0 %v971, 64
        %v999 = vpop.permute.xlu0 %998
        %1004 = vrot.lane.b32.xlu0 %v977, 96
        %v1005 = vpop.permute.xlu0 %1004
        %1006 = vrot.lane.b32.xlu0 %v983, 96
        %v1007 = vpop.permute.xlu0 %1006
        %vm1010 = vcmask 261120
        %v1011 = vsel %vm1010, %v941, %v989
        %v1012 = vsel %vm1010, %v947, %v991
        %vm1013 = vcmask 523264
        %v1014 = vsel %vm1013, %v1011, %v997
        %v1015 = vsel %vm1013, %v1012, %v999
        %vm1016 = vcmask 785408
        %v1017 = vsel %vm1016, %v1014, %v1005
        %v1018 = vsel %vm1016, %v1015, %v1007
        %v1019 = vld [vmem:[%s0] sm:$0xff]
        %v1020 = vld [vmem:[%s0 + $0x8] sm:$0xff]
        %v1021 = vld [vmem:[%s0 + $0x10] sm:$0xff]
        %v1022 = vld [vmem:[%s0 + $0x18] sm:$0xff]
        %v1024 = vsel %vm201, %v1019, 0
        %v1027 = vsel %vm201, %v1020, 0
        %v1030 = vsel %vm201, %v1021, 0
        %v1033 = vsel %vm201, %v1022, 0
        %1035 = vmatprep.subr.mxu0 0.0
        %v1036 = vand.u32 %v1017, 4294901760
        %1037 = vmatpush1.msra.mxu0 %v1036
        %1038 = vmatprep.subr.mxu0 0.0
        %v1039 = vand.u32 %v1018, 4294901760
        %1040 = vmatpush1.msra.mxu0 %v1039
        %1041 = vmatprep.subr.mxu0 0.0
        %1042 = vmatpush1.msra.mxu0 0.0
        %1043 = vmatprep.subr.mxu0 0.0
        %1044 = vmatpush1.msra.mxu0 0.0
        %1045 = vmatprep.subr.mxu0 0.0
        %1046 = vmatpush1.msra.mxu0 0.0
        %1047 = vmatprep.subr.mxu0 0.0
        %1048 = vmatpush1.msra.mxu0 0.0
        %1049 = vmatprep.subr.mxu0 0.0
        %1050 = vmatpush1.msra.mxu0 0.0
        %1051 = vmatprep.subr.mxu0 0.0
        %1052 = vmatpush1.msra.mxu0 0.0
        %1053 = vmatprep.subr.mxu0 0.0
        %1054 = vmatpush1.msra.mxu0 0.0
        %1055 = vmatprep.subr.mxu0 0.0
        %1056 = vmatpush1.msra.mxu0 0.0
        %1057 = vmatprep.subr.mxu0 0.0
        %1058 = vmatpush1.msra.mxu0 0.0
        %1059 = vmatprep.subr.mxu0 0.0
        %1060 = vmatpush1.msra.mxu0 0.0
        %1061 = vmatprep.subr.mxu0 0.0
        %1062 = vmatpush1.msra.mxu0 0.0
        %1063 = vmatprep.subr.mxu0 0.0
        %1064 = vmatpush1.msra.mxu0 0.0
        %1065 = vmatprep.subr.mxu0 0.0
        %1066 = vmatpush1.msra.mxu0 0.0
        %1067 = vmatprep.subr.mxu0 0.0
        %1068 = vmatpush1.msra.mxu0 0.0
        %1069 = vmatprep.subr.mxu0 0.0
        %1070 = vmatpush1.msra.mxu0 0.0
        %1071 = vmatprep.subr.mxu0 0.0
        %1072 = vmatpush1.msra.mxu0 0.0
        %1073 = vmatprep.subr.mxu0 0.0
        %1074 = vmatpush1.msra.mxu0 0.0
        %1075 = vmatprep.subr.mxu0 0.0
        %1076 = vmatpush1.msra.mxu0 0.0
        %1077 = vmatprep.subr.mxu0 0.0
        %1078 = vmatpush1.msra.mxu0 0.0
        %1079 = vmatprep.subr.mxu0 0.0
        %1080 = vmatpush1.msra.mxu0 0.0
        %1081 = vmatprep.subr.mxu0 0.0
        %1082 = vmatpush1.msra.mxu0 0.0
        %1083 = vmatprep.subr.mxu0 0.0
        %1084 = vmatpush1.msra.mxu0 0.0
        %1085 = vmatprep.subr.mxu0 0.0
        %1086 = vmatpush1.msra.mxu0 0.0
        %1087 = vmatprep.subr.mxu0 0.0
        %1088 = vmatpush1.msra.mxu0 0.0
        %1089 = vmatprep.subr.mxu0 0.0
        %1090 = vmatpush1.msra.mxu0 0.0
        %1091 = vmatprep.subr.mxu0 0.0
        %1092 = vmatpush1.msra.mxu0 0.0
        %1093 = vmatprep.subr.mxu0 0.0
        %1094 = vmatpush1.msra.mxu0 0.0
        %1095 = vmatprep.subr.mxu0 0.0
        %1096 = vmatpush1.msra.mxu0 0.0
        %1097 = vmatprep.subr.mxu0 0.0
        %1098 = vmatpush1.msra.mxu0 0.0
        %1099 = vmatprep.subr.mxu0 0.0
        %1100 = vmatpush1.msra.mxu0 0.0
        %1101 = vmatprep.mubr.f32.mxu0 0.0
        %v1102 = vand.u32 %v1024, 4294901760
        %v1103 = vsub.f32 %v1024, %v1102
        %v1104 = vand.u32 %v1103, 4294901760
        %v1105 = vsub.f32 %v1103, %v1104
        %v1106 = vand.u32 %v1105, 4294901760
        %1107 = vmatmul.mubr.f32.gmra.mrb[0].mxu0 %v1106
        %v1108 = vpop.f32.mrb[0].mxu0
        %v1109 = vadd.f32 0.0, %v1108
        %v1110 = vpop.f32.mrb[0].mxu0
        %1111 = vmatprep.mubr.f32.mxu0 0.0
        %v1112 = vand.u32 %v1027, 4294901760
        %v1113 = vsub.f32 %v1027, %v1112
        %v1114 = vand.u32 %v1113, 4294901760
        %v1115 = vsub.f32 %v1113, %v1114
        %v1116 = vand.u32 %v1115, 4294901760
        %1117 = vmatmul.mubr.f32.gmra.mrb[0].mxu0 %v1116
        %v1118 = vpop.f32.mrb[0].mxu0
        %v1119 = vadd.f32 0.0, %v1118
        %v1120 = vpop.f32.mrb[0].mxu0
        %1121 = vmatprep.mubr.f32.mxu0 0.0
        %v1122 = vand.u32 %v1030, 4294901760
        %v1123 = vsub.f32 %v1030, %v1122
        %v1124 = vand.u32 %v1123, 4294901760
        %v1125 = vsub.f32 %v1123, %v1124
        %v1126 = vand.u32 %v1125, 4294901760
        %1127 = vmatmul.mubr.f32.gmra.mrb[0].mxu0 %v1126
        %v1128 = vpop.f32.mrb[0].mxu0
        %v1129 = vadd.f32 0.0, %v1128
        %v1130 = vpop.f32.mrb[0].mxu0
        %1131 = vmatprep.mubr.f32.mxu0 0.0
        %v1132 = vand.u32 %v1033, 4294901760
        %v1133 = vsub.f32 %v1033, %v1132
        %v1134 = vand.u32 %v1133, 4294901760
        %v1135 = vsub.f32 %v1133, %v1134
        %v1136 = vand.u32 %v1135, 4294901760
        %1137 = vmatmul.mubr.f32.gmra.mrb[0].mxu0 %v1136
        %v1138 = vpop.f32.mrb[0].mxu0
        %v1139 = vadd.f32 0.0, %v1138
        %v1140 = vpop.f32.mrb[0].mxu0
        %1141 = vdwg.mxu0
        %1142 = vmatprep.subr.mxu0 0.0
        %v1143 = vand.u32 %v1017, 4294901760
        %v1144 = vsub.f32 %v1017, %v1143
        %v1145 = vand.u32 %v1144, 4294901760
        %v1146 = vsub.f32 %v1144, %v1145
        %v1147 = vand.u32 %v1146, 4294901760
        %1148 = vmatpush1.msra.mxu0 %v1147
        %1149 = vmatprep.subr.mxu0 0.0
        %v1150 = vand.u32 %v1018, 4294901760
        %v1151 = vsub.f32 %v1018, %v1150
        %v1152 = vand.u32 %v1151, 4294901760
        %v1153 = vsub.f32 %v1151, %v1152
        %v1154 = vand.u32 %v1153, 4294901760
        %1155 = vmatpush1.msra.mxu0 %v1154
        %1156 = vmatprep.subr.mxu0 0.0
        %1157 = vmatpush1.msra.mxu0 0.0
        %1158 = vmatprep.subr.mxu0 0.0
        %1159 = vmatpush1.msra.mxu0 0.0
        %1160 = vmatprep.subr.mxu0 0.0
        %1161 = vmatpush1.msra.mxu0 0.0
        %1162 = vmatprep.subr.mxu0 0.0
        %1163 = vmatpush1.msra.mxu0 0.0
        %1164 = vmatprep.subr.mxu0 0.0
        %1165 = vmatpush1.msra.mxu0 0.0
        %1166 = vmatprep.subr.mxu0 0.0
        %1167 = vmatpush1.msra.mxu0 0.0
        %1168 = vmatprep.subr.mxu0 0.0
        %1169 = vmatpush1.msra.mxu0 0.0
        %1170 = vmatprep.subr.mxu0 0.0
        %1171 = vmatpush1.msra.mxu0 0.0
        %1172 = vmatprep.subr.mxu0 0.0
        %1173 = vmatpush1.msra.mxu0 0.0
        %1174 = vmatprep.subr.mxu0 0.0
        %1175 = vmatpush1.msra.mxu0 0.0
        %1176 = vmatprep.subr.mxu0 0.0
        %1177 = vmatpush1.msra.mxu0 0.0
        %1178 = vmatprep.subr.mxu0 0.0
        %1179 = vmatpush1.msra.mxu0 0.0
        %1180 = vmatprep.subr.mxu0 0.0
        %1181 = vmatpush1.msra.mxu0 0.0
        %1182 = vmatprep.subr.mxu0 0.0
        %1183 = vmatpush1.msra.mxu0 0.0
        %1184 = vmatprep.subr.mxu0 0.0
        %1185 = vmatpush1.msra.mxu0 0.0
        %1186 = vmatprep.subr.mxu0 0.0
        %1187 = vmatpush1.msra.mxu0 0.0
        %1188 = vmatprep.subr.mxu0 0.0
        %1189 = vmatpush1.msra.mxu0 0.0
        %1190 = vmatprep.subr.mxu0 0.0
        %1191 = vmatpush1.msra.mxu0 0.0
        %1192 = vmatprep.subr.mxu0 0.0
        %1193 = vmatpush1.msra.mxu0 0.0
        %1194 = vmatprep.subr.mxu0 0.0
        %1195 = vmatpush1.msra.mxu0 0.0
        %1196 = vmatprep.subr.mxu0 0.0
        %1197 = vmatpush1.msra.mxu0 0.0
        %1198 = vmatprep.subr.mxu0 0.0
        %1199 = vmatpush1.msra.mxu0 0.0
        %1200 = vmatprep.subr.mxu0 0.0
        %1201 = vmatpush1.msra.mxu0 0.0
        %1202 = vmatprep.subr.mxu0 0.0
        %1203 = vmatpush1.msra.mxu0 0.0
        %1204 = vmatprep.subr.mxu0 0.0
        %1205 = vmatpush1.msra.mxu0 0.0
        %1206 = vmatprep.subr.mxu0 0.0
        %1207 = vmatpush1.msra.mxu0 0.0
        %1208 = vmatprep.subr.mxu0 0.0
        %1209 = vmatpush1.msra.mxu0 0.0
        %1210 = vmatprep.subr.mxu0 0.0
        %1211 = vmatpush1.msra.mxu0 0.0
        %1212 = vmatprep.subr.mxu0 0.0
        %1213 = vmatpush1.msra.mxu0 0.0
        %1214 = vmatprep.subr.mxu0 0.0
        %1215 = vmatpush1.msra.mxu0 0.0
        %1216 = vmatprep.mubr.f32.mxu0 0.0
        %v1217 = vand.u32 %v1024, 4294901760
        %1218 = vmatmul.mubr.f32.gmra.mrb[0].mxu0 %v1217
        %v1219 = vpop.f32.mrb[0].mxu0
        %v1220 = vadd.f32 %v1109, %v1219
        %v1221 = vpop.f32.mrb[0].mxu0
        %1222 = vmatprep.mubr.f32.mxu0 0.0
        %v1223 = vand.u32 %v1027, 4294901760
        %1224 = vmatmul.mubr.f32.gmra.mrb[0].mxu0 %v1223
        %v1225 = vpop.f32.mrb[0].mxu0
        %v1226 = vadd.f32 %v1119, %v1225
        %v1227 = vpop.f32.mrb[0].mxu0
        %1228 = vmatprep.mubr.f32.mxu0 0.0
        %v1229 = vand.u32 %v1030, 4294901760
        %1230 = vmatmul.mubr.f32.gmra.mrb[0].mxu0 %v1229
        %v1231 = vpop.f32.mrb[0].mxu0
        %v1232 = vadd.f32 %v1129, %v1231
        %v1233 = vpop.f32.mrb[0].mxu0
        %1234 = vmatprep.mubr.f32.mxu0 0.0
        %v1235 = vand.u32 %v1033, 4294901760
        %1236 = vmatmul.mubr.f32.gmra.mrb[0].mxu0 %v1235
        %v1237 = vpop.f32.mrb[0].mxu0
        %v1238 = vadd.f32 %v1139, %v1237
        %v1239 = vpop.f32.mrb[0].mxu0
        %1240 = vdwg.mxu0
        %1241 = vmatprep.subr.mxu0 0.0
        %v1242 = vand.u32 %v1017, 4294901760
        %v1243 = vsub.f32 %v1017, %v1242
        %1244 = vmatpush1.msra.mxu0 %v1243
        %1245 = vmatprep.subr.mxu0 0.0
        %v1246 = vand.u32 %v1018, 4294901760
        %v1247 = vsub.f32 %v1018, %v1246
        %1248 = vmatpush1.msra.mxu0 %v1247
        %1249 = vmatprep.subr.mxu0 0.0
        %1250 = vmatpush1.msra.mxu0 0.0
        %1251 = vmatprep.subr.mxu0 0.0
        %1252 = vmatpush1.msra.mxu0 0.0
        %1253 = vmatprep.subr.mxu0 0.0
        %1254 = vmatpush1.msra.mxu0 0.0
        %1255 = vmatprep.subr.mxu0 0.0
        %1256 = vmatpush1.msra.mxu0 0.0
        %1257 = vmatprep.subr.mxu0 0.0
        %1258 = vmatpush1.msra.mxu0 0.0
        %1259 = vmatprep.subr.mxu0 0.0
        %1260 = vmatpush1.msra.mxu0 0.0
        %1261 = vmatprep.subr.mxu0 0.0
        %1262 = vmatpush1.msra.mxu0 0.0
        %1263 = vmatprep.subr.mxu0 0.0
        %1264 = vmatpush1.msra.mxu0 0.0
        %1265 = vmatprep.subr.mxu0 0.0
        %1266 = vmatpush1.msra.mxu0 0.0
        %1267 = vmatprep.subr.mxu0 0.0
        %1268 = vmatpush1.msra.mxu0 0.0
        %1269 = vmatprep.subr.mxu0 0.0
        %1270 = vmatpush1.msra.mxu0 0.0
        %1271 = vmatprep.subr.mxu0 0.0
        %1272 = vmatpush1.msra.mxu0 0.0
        %1273 = vmatprep.subr.mxu0 0.0
        %1274 = vmatpush1.msra.mxu0 0.0
        %1275 = vmatprep.subr.mxu0 0.0
        %1276 = vmatpush1.msra.mxu0 0.0
        %1277 = vmatprep.subr.mxu0 0.0
        %1278 = vmatpush1.msra.mxu0 0.0
        %1279 = vmatprep.subr.mxu0 0.0
        %1280 = vmatpush1.msra.mxu0 0.0
        %1281 = vmatprep.subr.mxu0 0.0
        %1282 = vmatpush1.msra.mxu0 0.0
        %1283 = vmatprep.subr.mxu0 0.0
        %1284 = vmatpush1.msra.mxu0 0.0
        %1285 = vmatprep.subr.mxu0 0.0
        %1286 = vmatpush1.msra.mxu0 0.0
        %1287 = vmatprep.subr.mxu0 0.0
        %1288 = vmatpush1.msra.mxu0 0.0
        %1289 = vmatprep.subr.mxu0 0.0
        %1290 = vmatpush1.msra.mxu0 0.0
        %1291 = vmatprep.subr.mxu0 0.0
        %1292 = vmatpush1.msra.mxu0 0.0
        %1293 = vmatprep.subr.mxu0 0.0
        %1294 = vmatpush1.msra.mxu0 0.0
        %1295 = vmatprep.subr.mxu0 0.0
        %1296 = vmatpush1.msra.mxu0 0.0
        %1297 = vmatprep.subr.mxu0 0.0
        %1298 = vmatpush1.msra.mxu0 0.0
        %1299 = vmatprep.subr.mxu0 0.0
        %1300 = vmatpush1.msra.mxu0 0.0
        %1301 = vmatprep.subr.mxu0 0.0
        %1302 = vmatpush1.msra.mxu0 0.0
        %1303 = vmatprep.subr.mxu0 0.0
        %1304 = vmatpush1.msra.mxu0 0.0
        %1305 = vmatprep.subr.mxu0 0.0
        %1306 = vmatpush1.msra.mxu0 0.0
        %1307 = vmatprep.subr.mxu0 0.0
        %1308 = vmatpush1.msra.mxu0 0.0
        %1309 = vmatprep.mubr.f32.mxu0 0.0
        %v1310 = vand.u32 %v1024, 4294901760
        %v1311 = vsub.f32 %v1024, %v1310
        %1312 = vmatmul.mubr.f32.gmra.mrb[0].mxu0 %v1311
        %v1313 = vpop.f32.mrb[0].mxu0
        %v1314 = vadd.f32 %v1220, %v1313
        %v1315 = vpop.f32.mrb[0].mxu0
        %1316 = vmatprep.mubr.f32.mxu0 0.0
        %v1317 = vand.u32 %v1027, 4294901760
        %v1318 = vsub.f32 %v1027, %v1317
        %1319 = vmatmul.mubr.f32.gmra.mrb[0].mxu0 %v1318
        %v1320 = vpop.f32.mrb[0].mxu0
        %v1321 = vadd.f32 %v1226, %v1320
        %v1322 = vpop.f32.mrb[0].mxu0
        %1323 = vmatprep.mubr.f32.mxu0 0.0
        %v1324 = vand.u32 %v1030, 4294901760
        %v1325 = vsub.f32 %v1030, %v1324
        %1326 = vmatmul.mubr.f32.gmra.mrb[0].mxu0 %v1325
        %v1327 = vpop.f32.mrb[0].mxu0
        %v1328 = vadd.f32 %v1232, %v1327
        %v1329 = vpop.f32.mrb[0].mxu0
        %1330 = vmatprep.mubr.f32.mxu0 0.0
        %v1331 = vand.u32 %v1033, 4294901760
        %v1332 = vsub.f32 %v1033, %v1331
        %1333 = vmatmul.mubr.f32.gmra.mrb[0].mxu0 %v1332
        %v1334 = vpop.f32.mrb[0].mxu0
        %v1335 = vadd.f32 %v1238, %v1334
        %v1336 = vpop.f32.mrb[0].mxu0
        %1337 = vdwg.mxu0
        %1338 = vmatprep.subr.mxu0 0.0
        %v1339 = vand.u32 %v1017, 4294901760
        %1340 = vmatpush1.msra.mxu0 %v1339
        %1341 = vmatprep.subr.mxu0 0.0
        %v1342 = vand.u32 %v1018, 4294901760
        %1343 = vmatpush1.msra.mxu0 %v1342
        %1344 = vmatprep.subr.mxu0 0.0
        %1345 = vmatpush1.msra.mxu0 0.0
        %1346 = vmatprep.subr.mxu0 0.0
        %1347 = vmatpush1.msra.mxu0 0.0
        %1348 = vmatprep.subr.mxu0 0.0
        %1349 = vmatpush1.msra.mxu0 0.0
        %1350 = vmatprep.subr.mxu0 0.0
        %1351 = vmatpush1.msra.mxu0 0.0
        %1352 = vmatprep.subr.mxu0 0.0
        %1353 = vmatpush1.msra.mxu0 0.0
        %1354 = vmatprep.subr.mxu0 0.0
        %1355 = vmatpush1.msra.mxu0 0.0
        %1356 = vmatprep.subr.mxu0 0.0
        %1357 = vmatpush1.msra.mxu0 0.0
        %1358 = vmatprep.subr.mxu0 0.0
        %1359 = vmatpush1.msra.mxu0 0.0
        %1360 = vmatprep.subr.mxu0 0.0
        %1361 = vmatpush1.msra.mxu0 0.0
        %1362 = vmatprep.subr.mxu0 0.0
        %1363 = vmatpush1.msra.mxu0 0.0
        %1364 = vmatprep.subr.mxu0 0.0
        %1365 = vmatpush1.msra.mxu0 0.0
        %1366 = vmatprep.subr.mxu0 0.0
        %1367 = vmatpush1.msra.mxu0 0.0
        %1368 = vmatprep.subr.mxu0 0.0
        %1369 = vmatpush1.msra.mxu0 0.0
        %1370 = vmatprep.subr.mxu0 0.0
        %1371 = vmatpush1.msra.mxu0 0.0
        %1372 = vmatprep.subr.mxu0 0.0
        %1373 = vmatpush1.msra.mxu0 0.0
        %1374 = vmatprep.subr.mxu0 0.0
        %1375 = vmatpush1.msra.mxu0 0.0
        %1376 = vmatprep.subr.mxu0 0.0
        %1377 = vmatpush1.msra.mxu0 0.0
        %1378 = vmatprep.subr.mxu0 0.0
        %1379 = vmatpush1.msra.mxu0 0.0
        %1380 = vmatprep.subr.mxu0 0.0
        %1381 = vmatpush1.msra.mxu0 0.0
        %1382 = vmatprep.subr.mxu0 0.0
        %1383 = vmatpush1.msra.mxu0 0.0
        %1384 = vmatprep.subr.mxu0 0.0
        %1385 = vmatpush1.msra.mxu0 0.0
        %1386 = vmatprep.subr.mxu0 0.0
        %1387 = vmatpush1.msra.mxu0 0.0
        %1388 = vmatprep.subr.mxu0 0.0
        %1389 = vmatpush1.msra.mxu0 0.0
        %1390 = vmatprep.subr.mxu0 0.0
        %1391 = vmatpush1.msra.mxu0 0.0
        %1392 = vmatprep.subr.mxu0 0.0
        %1393 = vmatpush1.msra.mxu0 0.0
        %1394 = vmatprep.subr.mxu0 0.0
        %1395 = vmatpush1.msra.mxu0 0.0
        %1396 = vmatprep.subr.mxu0 0.0
        %1397 = vmatpush1.msra.mxu0 0.0
        %1398 = vmatprep.subr.mxu0 0.0
        %1399 = vmatpush1.msra.mxu0 0.0
        %1400 = vmatprep.subr.mxu0 0.0
        %1401 = vmatpush1.msra.mxu0 0.0
        %1402 = vmatprep.subr.mxu0 0.0
        %1403 = vmatpush1.msra.mxu0 0.0
        %1404 = vmatprep.mubr.f32.mxu0 0.0
        %v1405 = vand.u32 %v1024, 4294901760
        %v1406 = vsub.f32 %v1024, %v1405
        %v1407 = vand.u32 %v1406, 4294901760
        %1408 = vmatmul.mubr.f32.gmra.mrb[0].mxu0 %v1407
        %v1409 = vpop.f32.mrb[0].mxu0
        %v1410 = vadd.f32 %v1314, %v1409
        %v1411 = vpop.f32.mrb[0].mxu0
        %1412 = vmatprep.mubr.f32.mxu0 0.0
        %v1413 = vand.u32 %v1027, 4294901760
        %v1414 = vsub.f32 %v1027, %v1413
        %v1415 = vand.u32 %v1414, 4294901760
        %1416 = vmatmul.mubr.f32.gmra.mrb[0].mxu0 %v1415
        %v1417 = vpop.f32.mrb[0].mxu0
        %v1418 = vadd.f32 %v1321, %v1417
        %v1419 = vpop.f32.mrb[0].mxu0
        %1420 = vmatprep.mubr.f32.mxu0 0.0
        %v1421 = vand.u32 %v1030, 4294901760
        %v1422 = vsub.f32 %v1030, %v1421
        %v1423 = vand.u32 %v1422, 4294901760
        %1424 = vmatmul.mubr.f32.gmra.mrb[0].mxu0 %v1423
        %v1425 = vpop.f32.mrb[0].mxu0
        %v1426 = vadd.f32 %v1328, %v1425
        %v1427 = vpop.f32.mrb[0].mxu0
        %1428 = vmatprep.mubr.f32.mxu0 0.0
        %v1429 = vand.u32 %v1033, 4294901760
        %v1430 = vsub.f32 %v1033, %v1429
        %v1431 = vand.u32 %v1430, 4294901760
        %1432 = vmatmul.mubr.f32.gmra.mrb[0].mxu0 %v1431
        %v1433 = vpop.f32.mrb[0].mxu0
        %v1434 = vadd.f32 %v1335, %v1433
        %v1435 = vpop.f32.mrb[0].mxu0
        %1436 = vdwg.mxu0
        %1437 = vmatprep.subr.mxu0 0.0
        %v1438 = vand.u32 %v1017, 4294901760
        %v1439 = vsub.f32 %v1017, %v1438
        %v1440 = vand.u32 %v1439, 4294901760
        %1441 = vmatpush1.msra.mxu0 %v1440
        %1442 = vmatprep.subr.mxu0 0.0
        %v1443 = vand.u32 %v1018, 4294901760
        %v1444 = vsub.f32 %v1018, %v1443
        %v1445 = vand.u32 %v1444, 4294901760
        %1446 = vmatpush1.msra.mxu0 %v1445
        %1447 = vmatprep.subr.mxu0 0.0
        %1448 = vmatpush1.msra.mxu0 0.0
        %1449 = vmatprep.subr.mxu0 0.0
        %1450 = vmatpush1.msra.mxu0 0.0
        %1451 = vmatprep.subr.mxu0 0.0
        %1452 = vmatpush1.msra.mxu0 0.0
        %1453 = vmatprep.subr.mxu0 0.0
        %1454 = vmatpush1.msra.mxu0 0.0
        %1455 = vmatprep.subr.mxu0 0.0
        %1456 = vmatpush1.msra.mxu0 0.0
        %1457 = vmatprep.subr.mxu0 0.0
        %1458 = vmatpush1.msra.mxu0 0.0
        %1459 = vmatprep.subr.mxu0 0.0
        %1460 = vmatpush1.msra.mxu0 0.0
        %1461 = vmatprep.subr.mxu0 0.0
        %1462 = vmatpush1.msra.mxu0 0.0
        %1463 = vmatprep.subr.mxu0 0.0
        %1464 = vmatpush1.msra.mxu0 0.0
        %1465 = vmatprep.subr.mxu0 0.0
        %1466 = vmatpush1.msra.mxu0 0.0
        %1467 = vmatprep.subr.mxu0 0.0
        %1468 = vmatpush1.msra.mxu0 0.0
        %1469 = vmatprep.subr.mxu0 0.0
        %1470 = vmatpush1.msra.mxu0 0.0
        %1471 = vmatprep.subr.mxu0 0.0
        %1472 = vmatpush1.msra.mxu0 0.0
        %1473 = vmatprep.subr.mxu0 0.0
        %1474 = vmatpush1.msra.mxu0 0.0
        %1475 = vmatprep.subr.mxu0 0.0
        %1476 = vmatpush1.msra.mxu0 0.0
        %1477 = vmatprep.subr.mxu0 0.0
        %1478 = vmatpush1.msra.mxu0 0.0
        %1479 = vmatprep.subr.mxu0 0.0
        %1480 = vmatpush1.msra.mxu0 0.0
        %1481 = vmatprep.subr.mxu0 0.0
        %1482 = vmatpush1.msra.mxu0 0.0
        %1483 = vmatprep.subr.mxu0 0.0
        %1484 = vmatpush1.msra.mxu0 0.0
        %1485 = vmatprep.subr.mxu0 0.0
        %1486 = vmatpush1.msra.mxu0 0.0
        %1487 = vmatprep.subr.mxu0 0.0
        %1488 = vmatpush1.msra.mxu0 0.0
        %1489 = vmatprep.subr.mxu0 0.0
        %1490 = vmatpush1.msra.mxu0 0.0
        %1491 = vmatprep.subr.mxu0 0.0
        %1492 = vmatpush1.msra.mxu0 0.0
        %1493 = vmatprep.subr.mxu0 0.0
        %1494 = vmatpush1.msra.mxu0 0.0
        %1495 = vmatprep.subr.mxu0 0.0
        %1496 = vmatpush1.msra.mxu0 0.0
        %1497 = vmatprep.subr.mxu0 0.0
        %1498 = vmatpush1.msra.mxu0 0.0
        %1499 = vmatprep.subr.mxu0 0.0
        %1500 = vmatpush1.msra.mxu0 0.0
        %1501 = vmatprep.subr.mxu0 0.0
        %1502 = vmatpush1.msra.mxu0 0.0
        %1503 = vmatprep.subr.mxu0 0.0
        %1504 = vmatpush1.msra.mxu0 0.0
        %1505 = vmatprep.subr.mxu0 0.0
        %1506 = vmatpush1.msra.mxu0 0.0
        %1507 = vmatprep.mubr.f32.mxu0 0.0
        %v1508 = vand.u32 %v1024, 4294901760
        %1509 = vmatmul.mubr.f32.gmra.mrb[0].mxu0 %v1508
        %v1510 = vpop.f32.mrb[0].mxu0
        %v1511 = vadd.f32 %v1410, %v1510
        %v1512 = vpop.f32.mrb[0].mxu0
        %1513 = vmatprep.mubr.f32.mxu0 0.0
        %v1514 = vand.u32 %v1027, 4294901760
        %1515 = vmatmul.mubr.f32.gmra.mrb[0].mxu0 %v1514
        %v1516 = vpop.f32.mrb[0].mxu0
        %v1517 = vadd.f32 %v1418, %v1516
        %v1518 = vpop.f32.mrb[0].mxu0
        %1519 = vmatprep.mubr.f32.mxu0 0.0
        %v1520 = vand.u32 %v1030, 4294901760
        %1521 = vmatmul.mubr.f32.gmra.mrb[0].mxu0 %v1520
        %v1522 = vpop.f32.mrb[0].mxu0
        %v1523 = vadd.f32 %v1426, %v1522
        %v1524 = vpop.f32.mrb[0].mxu0
        %1525 = vmatprep.mubr.f32.mxu0 0.0
        %v1526 = vand.u32 %v1033, 4294901760
        %1527 = vmatmul.mubr.f32.gmra.mrb[0].mxu0 %v1526
        %v1528 = vpop.f32.mrb[0].mxu0
        %v1529 = vadd.f32 %v1434, %v1528
        %v1530 = vpop.f32.mrb[0].mxu0
        %1531 = vdwg.mxu0
        %1532 = vmatprep.subr.mxu0 0.0
        %v1533 = vand.u32 %v1017, 4294901760
        %1534 = vmatpush1.msra.mxu0 %v1533
        %1535 = vmatprep.subr.mxu0 0.0
        %v1536 = vand.u32 %v1018, 4294901760
        %1537 = vmatpush1.msra.mxu0 %v1536
        %1538 = vmatprep.subr.mxu0 0.0
        %1539 = vmatpush1.msra.mxu0 0.0
        %1540 = vmatprep.subr.mxu0 0.0
        %1541 = vmatpush1.msra.mxu0 0.0
        %1542 = vmatprep.subr.mxu0 0.0
        %1543 = vmatpush1.msra.mxu0 0.0
        %1544 = vmatprep.subr.mxu0 0.0
        %1545 = vmatpush1.msra.mxu0 0.0
        %1546 = vmatprep.subr.mxu0 0.0
        %1547 = vmatpush1.msra.mxu0 0.0
        %1548 = vmatprep.subr.mxu0 0.0
        %1549 = vmatpush1.msra.mxu0 0.0
        %1550 = vmatprep.subr.mxu0 0.0
        %1551 = vmatpush1.msra.mxu0 0.0
        %1552 = vmatprep.subr.mxu0 0.0
        %1553 = vmatpush1.msra.mxu0 0.0
        %1554 = vmatprep.subr.mxu0 0.0
        %1555 = vmatpush1.msra.mxu0 0.0
        %1556 = vmatprep.subr.mxu0 0.0
        %1557 = vmatpush1.msra.mxu0 0.0
        %1558 = vmatprep.subr.mxu0 0.0
        %1559 = vmatpush1.msra.mxu0 0.0
        %1560 = vmatprep.subr.mxu0 0.0
        %1561 = vmatpush1.msra.mxu0 0.0
        %1562 = vmatprep.subr.mxu0 0.0
        %1563 = vmatpush1.msra.mxu0 0.0
        %1564 = vmatprep.subr.mxu0 0.0
        %1565 = vmatpush1.msra.mxu0 0.0
        %1566 = vmatprep.subr.mxu0 0.0
        %1567 = vmatpush1.msra.mxu0 0.0
        %1568 = vmatprep.subr.mxu0 0.0
        %1569 = vmatpush1.msra.mxu0 0.0
        %1570 = vmatprep.subr.mxu0 0.0
        %1571 = vmatpush1.msra.mxu0 0.0
        %1572 = vmatprep.subr.mxu0 0.0
        %1573 = vmatpush1.msra.mxu0 0.0
        %1574 = vmatprep.subr.mxu0 0.0
        %1575 = vmatpush1.msra.mxu0 0.0
        %1576 = vmatprep.subr.mxu0 0.0
        %1577 = vmatpush1.msra.mxu0 0.0
        %1578 = vmatprep.subr.mxu0 0.0
        %1579 = vmatpush1.msra.mxu0 0.0
        %1580 = vmatprep.subr.mxu0 0.0
        %1581 = vmatpush1.msra.mxu0 0.0
        %1582 = vmatprep.subr.mxu0 0.0
        %1583 = vmatpush1.msra.mxu0 0.0
        %1584 = vmatprep.subr.mxu0 0.0
        %1585 = vmatpush1.msra.mxu0 0.0
        %1586 = vmatprep.subr.mxu0 0.0
        %1587 = vmatpush1.msra.mxu0 0.0
        %1588 = vmatprep.subr.mxu0 0.0
        %1589 = vmatpush1.msra.mxu0 0.0
        %1590 = vmatprep.subr.mxu0 0.0
        %1591 = vmatpush1.msra.mxu0 0.0
        %1592 = vmatprep.subr.mxu0 0.0
        %1593 = vmatpush1.msra.mxu0 0.0
        %1594 = vmatprep.subr.mxu0 0.0
        %1595 = vmatpush1.msra.mxu0 0.0
        %1596 = vmatprep.subr.mxu0 0.0
        %1597 = vmatpush1.msra.mxu0 0.0
        %1598 = vmatprep.mubr.f32.mxu0 0.0
        %v1599 = vand.u32 %v1024, 4294901760
        %1600 = vmatmul.mubr.f32.gmra.mrb[0].mxu0 %v1599
        %v1601 = vpop.f32.mrb[0].mxu0
        %v1602 = vadd.f32 %v1511, %v1601
        %v1603 = vpop.f32.mrb[0].mxu0
        %1604 = vmatprep.mubr.f32.mxu0 0.0
        %v1605 = vand.u32 %v1027, 4294901760
        %1606 = vmatmul.mubr.f32.gmra.mrb[0].mxu0 %v1605
        %v1607 = vpop.f32.mrb[0].mxu0
        %v1608 = vadd.f32 %v1517, %v1607
        %v1609 = vpop.f32.mrb[0].mxu0
        %1610 = vmatprep.mubr.f32.mxu0 0.0
        %v1611 = vand.u32 %v1030, 4294901760
        %1612 = vmatmul.mubr.f32.gmra.mrb[0].mxu0 %v1611
        %v1613 = vpop.f32.mrb[0].mxu0
        %v1614 = vadd.f32 %v1523, %v1613
        %v1615 = vpop.f32.mrb[0].mxu0
        %1616 = vmatprep.mubr.f32.mxu0 0.0
        %v1617 = vand.u32 %v1033, 4294901760
        %1618 = vmatmul.mubr.f32.gmra.mrb[0].mxu0 %v1617
        %v1619 = vpop.f32.mrb[0].mxu0
        %v1620 = vadd.f32 %v1529, %v1619
        %v1621 = vpop.f32.mrb[0].mxu0
        %1622 = vdwg.mxu0
        %1623 = vst [vmem:[%s189] sm:$0xff] %v1602
        %1624 = vst [vmem:[%s189 + $0x8] sm:$0xff] %v1608
        %1625 = vst [vmem:[%s189 + $0x10] sm:$0xff] %v1614
        %1626 = vst [vmem:[%s189 + $0x18] sm:$0xff] %v1620
        %s1627 = sand.u32 %s96, 1
        %s1628 = scalar_lea.sflag [#allocation4], %s1627
        %s1629 = sand.u32 %s96, 1
        %s1630 = smul.addr %s1629, 32
        %s1631 = scalar_lea.vmem [#allocation5], %s1630
        // Predicated region
        $region37: #{tpu_custom_call.1} parent=31 // pred_check
          %p1632 = pneg %p106
        $region38: #{tpu_custom_call.1} parent=31 // pred_check_branch
          %1634 = sbr.rel (%p1632) target = $region40
        $region39: #{tpu_custom_call.1} parent=31 // pred_region
          %s1636 = ssub.s32 512, 512
          %1637 = vsyncadd %s1628, %s1636
          %s1638 = smul.addr %s20, 4
          %s1639 = smul.addr %s1638, 128
          %s1640 = scalar_lea.hbm %s3, %s1639
          %s1641 = sshll.u32 %s1631, 4
          %s1642 = int_to_ptr.vmem [resolvable:$true] %s1641
          %1647 = dma.vmem_to_hbm [thread:$0]  %s1642, 512, %s1640, %s1628, 128, 128, 8
        $region40: #{tpu_custom_call.1} parent=31 // pred_fallthru
          _
      $region32: #{tpu_custom_call.1} parent=5 // pred_fallthru
        _
      %p1648 = scmp.le.s32.totalorder 2, %s15
      // Predicated region
      $region41: #{tpu_custom_call.1} parent=5 // pred_check
        %p1649 = pneg %p1648
      $region42: #{tpu_custom_call.1} parent=5 // pred_check_branch
        %1651 = sbr.rel (%p1649) target = $region44
      $region43: #{tpu_custom_call.1} parent=5 // pred_region
        %s1652 = ssub.s32 %s15, 2
        // Predicated region
        $region45: #{tpu_custom_call.1} parent=43 // pred_check
          %p1653 = pneg %p112
        $region46: #{tpu_custom_call.1} parent=43 // pred_check_branch
          %1655 = sbr.rel (%p1653) target = $region48
        $region47: #{tpu_custom_call.1} parent=43 // pred_region
          %s1656 = sand.u32 %s97, 1
          %s1657 = scalar_lea.sflag [#allocation4], %s1656
          %s1658 = sand.u32 %s97, 1
          %s1659 = smul.addr %s1658, 32
          %s1660 = scalar_lea.vmem [#allocation5], %s1659
          %1661 = dma.done %s1657, 512
        $region48: #{tpu_custom_call.1} parent=43 // pred_fallthru
          _
      $region44: #{tpu_custom_call.1} parent=5 // pred_fallthru
        _
    $region6: #{tpu_custom_call.1} parent=1 // loop_footer
      %s19 = sadd.s32 1, %s15
    $region7: #{tpu_custom_call.1} parent=1 // loop_footer_branch
      %14 = sbr.rel target = $region3
    $region8: #{tpu_custom_call.1} parent=1 // loop_exit
      _
    %1662 = vsyncpa [#allocation3], 1
    %s1663 = scalar_lea.sflag [#allocation3], 1
    %1664 = vsyncpa %s1663, 1
    %1665 = vsyncpa [#allocation4], 1
    %s1666 = scalar_lea.sflag [#allocation4], 1
    %1667 = vsyncpa %s1666, 1

</llo_original>
